<compile_context>
chip_gen: v5e
topology: v5e:2x2
jax: 0.10.0
libtpu: 0.0.40
codegen_flags: <defaults>
</compile_context>

<pallas_src>
import functools

import jax
import jax.numpy as jnp
from jax.experimental import pallas as pl
from jax.experimental.pallas import tpu as pltpu

HIDDEN = 768
LANE = 128


def _round_up(x, m):
    return ((x + m - 1) // m) * m


def _default_tanh_dtype(matmul_dtype):
    """bf16 tanh only where the EUP actually supports bf16 (v6e / v7x)."""
    if jnp.dtype(matmul_dtype) != jnp.dtype(jnp.bfloat16):
        return jnp.float32
    try:
        kind = jax.devices()[0].device_kind.lower()
    except Exception:  # pragma: no cover - defensive (interpret mode etc.)
        return jnp.float32
    if "v6" in kind or "v7" in kind:
        return jnp.bfloat16
    return jnp.float32


def _head_kernel(x_ref, w1_ref, b1_ref, w2_ref, b2_ref, o_ref, *,
                 matmul_dtype, tanh_dtype):
    # x_ref:  (tm, H)   native activation dtype (cast to MXU dtype in-kernel)
    # w1_ref: (H, H)    matmul dtype          b1_ref: (1, H)    f32
    # w2_ref: (H, Lp)   matmul dtype          b2_ref: (1, Lp)   f32
    # o_ref:  (tm, Lp)  caller dtype (lane-dense, Lp multiple of 128)
    x = x_ref[...].astype(matmul_dtype)            # VPU cast hides under MXU work
    h = jnp.dot(x, w1_ref[...], preferred_element_type=jnp.float32) + b1_ref[...]
    # tanh on the EUP: bf16 on v6e/v7x, f32 on v5-class chips / f32 path.
    h = jnp.tanh(h.astype(tanh_dtype)).astype(matmul_dtype)
    out = jnp.dot(h, w2_ref[...], preferred_element_type=jnp.float32) + b2_ref[...]
    o_ref[...] = out.astype(o_ref.dtype)


def prepare_params(w_dense, b_dense, w_out, b_out, *, matmul_dtype=jnp.bfloat16):
    """One-time parameter preparation (hoisted out of the per-call path).

    Weights are stored pre-transposed for right-multiplication: w_dense [768,768],
    w_out [768, num_labels]. The label dim is zero-padded to a multiple of 128 so the
    kernel's output store is lane-dense (no vst.msk partial stores)."""
    num_labels = w_out.shape[-1]
    L_pad = _round_up(max(num_labels, LANE), LANE)
    w1 = jnp.asarray(w_dense).astype(matmul_dtype)
    b1 = jnp.reshape(jnp.asarray(b_dense), (1, HIDDEN)).astype(jnp.float32)
    w2 = jnp.asarray(w_out).astype(matmul_dtype)
    b2 = jnp.reshape(jnp.asarray(b_out), (1, num_labels)).astype(jnp.float32)
    if L_pad != num_labels:
        w2 = jnp.pad(w2, ((0, 0), (0, L_pad - num_labels)))
        b2 = jnp.pad(b2, ((0, 0), (0, L_pad - num_labels)))
    return {"w1": w1, "b1": b1, "w2": w2, "b2": b2, "num_labels": num_labels}


def classification_head(features, params, *, tm=512, tanh_dtype=None):
    """features: [B, 768] (any float dtype). params: output of prepare_params().
    Returns [B, num_labels] logits in features.dtype. Dropout is identity at inference."""
    B, H = features.shape
    assert H == HIDDEN
    w1, b1, w2, b2 = params["w1"], params["b1"], params["w2"], params["b2"]
    num_labels = params["num_labels"]
    L_pad = w2.shape[-1]
    matmul_dtype = w1.dtype
    out_dtype = features.dtype
    if tanh_dtype is None:
        tanh_dtype = _default_tanh_dtype(matmul_dtype)

    # --- tile sizing --------------------------------------------------------
    # Sublane alignment of the activation block follows the DMA'd dtype (f32 -> 8, 16-bit -> 16).
    row_align = 16 if jnp.dtype(features.dtype).itemsize == 2 else 8
    tm_eff = min(tm, _round_up(B, row_align))
    # Prefer >= 2 grid steps once tiles stay reasonably large (>=128 rows): gives the pipeline
    # something to overlap and lets the "parallel" axis shard across both TensorCores on v7x.
    half = _round_up(pl.cdiv(B, 2), row_align)
    if half >= 128:
        tm_eff = min(tm_eff, half)

    x = features
    if B < tm_eff:  # only tiny batches: pad up to one aligned tile (negligible copy)
        x = jnp.pad(x, ((0, tm_eff - B), (0, 0)))
    B_x = x.shape[0]
    grid_m = pl.cdiv(B_x, tm_eff)  # ragged last block handled by Pallas (masked writes)

    cost = pl.CostEstimate(
        flops=2 * B_x * (H * H + H * L_pad),
        transcendentals=B_x * H,
        bytes_accessed=(x.size * x.dtype.itemsize
                        + w1.size * w1.dtype.itemsize + b1.size * b1.dtype.itemsize
                        + w2.size * w2.dtype.itemsize + b2.size * b2.dtype.itemsize
                        + B_x * L_pad * jnp.dtype(out_dtype).itemsize),
    )

    kernel = functools.partial(_head_kernel, matmul_dtype=matmul_dtype,
                               tanh_dtype=tanh_dtype)

    out_padded = pl.pallas_call(
        kernel,
        out_shape=jax.ShapeDtypeStruct((B_x, L_pad), out_dtype),
        grid_spec=pltpu.PrefetchScalarGridSpec(
            num_scalar_prefetch=0,
            grid=(grid_m,),
            in_specs=[
                pl.BlockSpec((tm_eff, H), lambda i: (i, 0)),   # activations tile (streams)
                # Constant index_maps -> weights/biases stay VMEM-resident (no per-step re-DMA).
                pl.BlockSpec((H, H), lambda i: (0, 0)),        # dense weight
                pl.BlockSpec((1, H), lambda i: (0, 0)),        # dense bias (f32)
                pl.BlockSpec((H, L_pad), lambda i: (0, 0)),    # out_proj weight (lane-padded)
                pl.BlockSpec((1, L_pad), lambda i: (0, 0)),    # out_proj bias (f32)
            ],
            out_specs=pl.BlockSpec((tm_eff, L_pad), lambda i: (i, 0)),
        ),
        compiler_params=pltpu.CompilerParams(
            dimension_semantics=("parallel",),  # batch-tile axis shards across TCs on v7x
            vmem_limit_bytes=(48 * 1024 * 1024) if tm_eff >= 1024 else None,
        ),
        cost_estimate=cost,
    )(x, w1, b1, w2, b2)

    return out_padded[:B, :num_labels]


def _reference(features, w_dense, b_dense, w_out, b_out):
    h = jnp.tanh(features @ w_dense + jnp.reshape(b_dense, (1, -1)))
    return h @ w_out + jnp.reshape(b_out, (1, -1))


if __name__ == "__main__":
    num_labels = 3   # e.g. FEVER: SUPPORTS / REFUTES / NOT ENOUGH INFO
    batch = 8

    key = jax.random.PRNGKey(0)
    k_x, k_w1, k_b1, k_w2, k_b2 = jax.random.split(key, 5)

    features = jax.random.normal(k_x, (batch, HIDDEN), dtype=jnp.float32)

    # Deterministic synthetic parameters (shapes match nn.Linear(768,768) / nn.Linear(768,L)),
    # stored pre-transposed for right-multiplication.
    w_dense = jax.random.normal(k_w1, (HIDDEN, HIDDEN), dtype=jnp.float32) * 0.02
    b_dense = jax.random.normal(k_b1, (1, HIDDEN), dtype=jnp.float32) * 0.02
    w_out = jax.random.normal(k_w2, (HIDDEN, num_labels), dtype=jnp.float32) * 0.02
    b_out = jax.random.normal(k_b2, (1, num_labels), dtype=jnp.float32) * 0.02

    ref = _reference(features, w_dense, b_dense, w_out, b_out)

    # f32 MXU-operand path: tight check against the reference.
    params_f32 = prepare_params(w_dense, b_dense, w_out, b_out, matmul_dtype=jnp.float32)
    out_f32 = jax.block_until_ready(classification_head(features, params_f32))
    assert out_f32.shape == (batch, num_labels)
    assert out_f32.dtype == features.dtype
    assert jnp.allclose(out_f32, ref, atol=1e-4, rtol=1e-4)

    # Default bf16 MXU path (f32 accumulation): weights prepared once at init, looser tolerance
    # for the bf16 mantissa of 768-length dot products.
    params_bf16 = prepare_params(w_dense, b_dense, w_out, b_out)
    out_bf16 = jax.block_until_ready(classification_head(features, params_bf16))
    assert out_bf16.shape == (batch, num_labels)
    assert jnp.allclose(out_bf16, ref, atol=5e-2, rtol=5e-2)

    print("KERNEL_OK")
</pallas_src>

<mosaic_0001>
module attributes {stable_mosaic.version = 11 : i64} {
  func.func @_head_kernel(%arg0: i32, %arg1: memref<8x768xf32, #tpu.memory_space<vmem>>, %arg2: memref<768x768xf32, #tpu.memory_space<vmem>>, %arg3: memref<1x768xf32, #tpu.memory_space<vmem>>, %arg4: memref<768x128xf32, #tpu.memory_space<vmem>>, %arg5: memref<1x128xf32, #tpu.memory_space<vmem>>, %arg6: memref<8x128xf32, #tpu.memory_space<vmem>>) attributes {dimension_semantics = [#tpu.dimension_semantics<parallel>], iteration_bounds = array<i64: 1>, scalar_prefetch = 0 : i64, scratch_operands = 0 : i64, tpu.core_type = #tpu.core_type<tc>, window_params = [{transform_indices = @transform_0, window_bounds = array<i64: 8, 768>}, {pipeline_mode = #tpu.pipeline_mode<synchronous>, transform_indices = @transform_1, window_bounds = array<i64: 768, 768>}, {pipeline_mode = #tpu.pipeline_mode<synchronous>, transform_indices = @transform_2, window_bounds = array<i64: 1, 768>}, {pipeline_mode = #tpu.pipeline_mode<synchronous>, transform_indices = @transform_3, window_bounds = array<i64: 768, 128>}, {pipeline_mode = #tpu.pipeline_mode<synchronous>, transform_indices = @transform_4, window_bounds = array<i64: 1, 128>}, {transform_indices = @transform_5, window_bounds = array<i64: 8, 128>}]} {
    %c0 = arith.constant 0 : index
    %c0_0 = arith.constant 0 : index
    %0 = vector.load %arg1[%c0, %c0_0] : memref<8x768xf32, #tpu.memory_space<vmem>>, vector<8x768xf32>
    %c0_1 = arith.constant 0 : index
    %c0_2 = arith.constant 0 : index
    %1 = vector.load %arg2[%c0_1, %c0_2] : memref<768x768xf32, #tpu.memory_space<vmem>>, vector<768x768xf32>
    %cst = arith.constant dense<0.000000e+00> : vector<8x768xf32>
    %2 = tpu.matmul %0, %1, %cst {dimension_numbers = #tpu.dot_dimension_numbers<[1], [0], [0], [1], [0, 0, 1, 1], [], []>} : vector<8x768xf32>, vector<768x768xf32>, vector<8x768xf32> -> vector<8x768xf32>
    %c0_3 = arith.constant 0 : index
    %c0_4 = arith.constant 0 : index
    %3 = vector.load %arg3[%c0_3, %c0_4] : memref<1x768xf32, #tpu.memory_space<vmem>>, vector<1x768xf32>
    %4 = vector.broadcast %3 : vector<1x768xf32> to vector<8x768xf32>
    %5 = arith.addf %2, %4 : vector<8x768xf32>
    %6 = math.tanh %5 : vector<8x768xf32>
    %c0_5 = arith.constant 0 : index
    %c0_6 = arith.constant 0 : index
    %7 = vector.load %arg4[%c0_5, %c0_6] : memref<768x128xf32, #tpu.memory_space<vmem>>, vector<768x128xf32>
    %cst_7 = arith.constant dense<0.000000e+00> : vector<8x128xf32>
    %8 = tpu.matmul %6, %7, %cst_7 {dimension_numbers = #tpu.dot_dimension_numbers<[1], [0], [0], [1], [0, 0, 1, 1], [], []>} : vector<8x768xf32>, vector<768x128xf32>, vector<8x128xf32> -> vector<8x128xf32>
    %c0_8 = arith.constant 0 : index
    %c0_9 = arith.constant 0 : index
    %9 = vector.load %arg5[%c0_8, %c0_9] : memref<1x128xf32, #tpu.memory_space<vmem>>, vector<1x128xf32>
    %10 = vector.broadcast %9 : vector<1x128xf32> to vector<8x128xf32>
    %11 = arith.addf %8, %10 : vector<8x128xf32>
    %c0_10 = arith.constant 0 : index
    %c0_11 = arith.constant 0 : index
    %12 = vector.load %arg6[%c0_10, %c0_11] : memref<8x128xf32, #tpu.memory_space<vmem>>, vector<8x128xf32>
    tpu.vector_store %arg6[%c0_10, %c0_11], %11 {strides = array<i32>} : memref<8x128xf32, #tpu.memory_space<vmem>>, vector<8x128xf32>,
    return
  }
  func.func @transform_0(%arg0: i32) -> (i32, i32) {
    %c0_i32 = arith.constant 0 : i32
    %c0_i32_0 = arith.constant 0 : i32
    return %arg0, %c0_i32 : i32, i32
  }
  func.func @transform_1(%arg0: i32) -> (i32, i32) {
    %c0_i32 = arith.constant 0 : i32
    %c0_i32_0 = arith.constant 0 : i32
    %c0_i32_1 = arith.constant 0 : i32
    return %c0_i32, %c0_i32_0 : i32, i32
  }
  func.func @transform_2(%arg0: i32) -> (i32, i32) {
    %c0_i32 = arith.constant 0 : i32
    %c0_i32_0 = arith.constant 0 : i32
    %c0_i32_1 = arith.constant 0 : i32
    return %c0_i32, %c0_i32_0 : i32, i32
  }
  func.func @transform_3(%arg0: i32) -> (i32, i32) {
    %c0_i32 = arith.constant 0 : i32
    %c0_i32_0 = arith.constant 0 : i32
    %c0_i32_1 = arith.constant 0 : i32
    return %c0_i32, %c0_i32_0 : i32, i32
  }
  func.func @transform_4(%arg0: i32) -> (i32, i32) {
    %c0_i32 = arith.constant 0 : i32
    %c0_i32_0 = arith.constant 0 : i32
    %c0_i32_1 = arith.constant 0 : i32
    return %c0_i32, %c0_i32_0 : i32, i32
  }
  func.func @transform_5(%arg0: i32) -> (i32, i32) {
    %c0_i32 = arith.constant 0 : i32
    %c0_i32_0 = arith.constant 0 : i32
    return %arg0, %c0_i32 : i32, i32
  }
}

</mosaic_0001>

<llo_original>
// kernel: tpu_custom_call.1
$region0: #{tpu_custom_call.1}
  #allocation0 [shape = 'u32[]', space=smem, size = 0x4, offset = 0x4, fixed_abs, tag = 'smem constant byte address 0x4 - core index']
  #allocation1 [shape = 'u32[72,128]{1,0:T(1,128)}', space=vmem, size = 0x9000, scoped, tag = 'internal scratch']
  %s0 = inlined_call_operand.hbm [shape: f32[8,768], index: 0, kind: input, shape index: {}]
  %s1 = inlined_call_operand.hbm [shape: f32[768,768], index: 1, kind: input, shape index: {}]
  %s2 = inlined_call_operand.hbm [shape: f32[1,768], index: 2, kind: input, shape index: {}]
  %s3 = inlined_call_operand.hbm [shape: f32[768,128], index: 3, kind: input, shape index: {}]
  %s4 = inlined_call_operand.hbm [shape: f32[1,128], index: 4, kind: input, shape index: {}]
  %s5 = inlined_call_operand.hbm [shape: f32[8,128], index: 5, kind: output, shape index: {}]
  %s6 = sld [smem:[#allocation0]]
  $region50: #{tpu_custom_call.1} parent=0
    _
  %s8 = ssub.s32 1, %s6
  %s9 = scalar_select 0, %s8, %s6
  $region1: #{tpu_custom_call.1} parent=0
    #allocation2 [shape = 'u8[24576]{0}', space=vmem, size = 0x6000, scoped, tag = 'input window, operand 0, single buffered']
    #allocation3 [shape = 's32[1]{0}', space=sflag, size = 0x4, scoped, tag = 'scoped memory for tpu_custom_call.1']
    #allocation4 [shape = 's32[1]{0}', space=sflag, size = 0x4, scoped, tag = 'scoped memory for tpu_custom_call.1']
    #allocation5 [shape = 'u8[2359296]{0}', space=vmem, size = 0x240000, scoped, tag = 'input window, operand 1, single buffered']
    #allocation6 [shape = 's32[1]{0}', space=sflag, size = 0x4, scoped, tag = 'scoped memory for tpu_custom_call.1']
    #allocation7 [shape = 'u8[3072]{0}', space=vmem, size = 0xc00, scoped, tag = 'input window, operand 2, single buffered']
    #allocation8 [shape = 'u8[393216]{0}', space=vmem, size = 0x60000, scoped, tag = 'input window, operand 3, single buffered']
    #allocation9 [shape = 's32[1]{0}', space=sflag, size = 0x4, scoped, tag = 'scoped memory for tpu_custom_call.1']
    #allocation10 [shape = 'u8[512]{0}', space=vmem, size = 0x400, scoped, tag = 'input window, operand 4, single buffered']
    #allocation11 [shape = 'u8[4096]{0}', space=vmem, size = 0x1000, scoped, tag = 'output window, operand 0, single buffered']
    %10 = vsyncpa [#allocation3], 0
    %11 = vsyncpa [#allocation6], 0
    %12 = vsyncpa [#allocation9], 0
    %13 = vsyncpa [#allocation4], 0
    // Predicated region
    $region2: #{tpu_custom_call.1} parent=1 // pred_check
      _
    $region3: #{tpu_custom_call.1} parent=1 // pred_check_branch
      %15 = sbr.rel (0) target = $region5
    $region4: #{tpu_custom_call.1} parent=1 // pred_region
      %17 = vsyncadd [#allocation3], 0
      %s19 = sshll.u32 %s0, 4
      %s20 = int_to_ptr.hbm [resolvable:$true] %s19
      %s21 = sshll.u32 [#allocation2], 4
      %s22 = int_to_ptr.vmem [resolvable:$true] %s21
      %24 = dma.hbm_to_vmem [thread:$0]  %s20, 768, %s22, [#allocation3]
    $region5: #{tpu_custom_call.1} parent=1 // pred_fallthru
      _
    // Predicated region
    $region6: #{tpu_custom_call.1} parent=1 // pred_check
      _
    $region7: #{tpu_custom_call.1} parent=1 // pred_check_branch
      %26 = sbr.rel (0) target = $region9
    $region8: #{tpu_custom_call.1} parent=1 // pred_region
      %28 = vsyncadd [#allocation6], 0
      %s29 = sshll.u32 %s1, 4
      %s30 = int_to_ptr.hbm [resolvable:$true] %s29
      %s31 = sshll.u32 [#allocation5], 4
      %s32 = int_to_ptr.vmem [resolvable:$true] %s31
      %37 = dma.hbm_to_vmem [thread:$0]  %s30, 73728, %s32, [#allocation6], 768, 768, 48
    $region9: #{tpu_custom_call.1} parent=1 // pred_fallthru
      _
    // Predicated region
    $region10: #{tpu_custom_call.1} parent=1 // pred_check
      _
    $region11: #{tpu_custom_call.1} parent=1 // pred_check_branch
      %39 = sbr.rel (0) target = $region13
    $region12: #{tpu_custom_call.1} parent=1 // pred_region
      %41 = vsyncadd [#allocation6], 0
      %s43 = sshll.u32 %s2, 4
      %s44 = int_to_ptr.hbm [resolvable:$true] %s43
      %s45 = sshll.u32 [#allocation7], 4
      %s46 = int_to_ptr.vmem [resolvable:$true] %s45
      %48 = dma.hbm_to_vmem [thread:$0]  %s44, 96, %s46, [#allocation6]
    $region13: #{tpu_custom_call.1} parent=1 // pred_fallthru
      _
    // Predicated region
    $region14: #{tpu_custom_call.1} parent=1 // pred_check
      _
    $region15: #{tpu_custom_call.1} parent=1 // pred_check_branch
      %50 = sbr.rel (0) target = $region17
    $region16: #{tpu_custom_call.1} parent=1 // pred_region
      %52 = vsyncadd [#allocation9], 0
      %s53 = sshll.u32 %s3, 4
      %s54 = int_to_ptr.hbm [resolvable:$true] %s53
      %s55 = sshll.u32 [#allocation8], 4
      %s56 = int_to_ptr.vmem [resolvable:$true] %s55
      %61 = dma.hbm_to_vmem [thread:$0]  %s54, 12288, %s56, [#allocation9], 128, 128, 8
    $region17: #{tpu_custom_call.1} parent=1 // pred_fallthru
      _
    // Predicated region
    $region18: #{tpu_custom_call.1} parent=1 // pred_check
      _
    $region19: #{tpu_custom_call.1} parent=1 // pred_check_branch
      %63 = sbr.rel (0) target = $region21
    $region20: #{tpu_custom_call.1} parent=1 // pred_region
      %65 = vsyncadd [#allocation9], 0
      %s67 = sshll.u32 %s4, 4
      %s68 = int_to_ptr.hbm [resolvable:$true] %s67
      %s69 = sshll.u32 [#allocation10], 4
      %s70 = int_to_ptr.vmem [resolvable:$true] %s69
      %72 = dma.hbm_to_vmem [thread:$0]  %s68, 16, %s70, [#allocation9]
    $region21: #{tpu_custom_call.1} parent=1 // pred_fallthru
      _
    // Predicated region
    $region22: #{tpu_custom_call.1} parent=1 // pred_check
      _
    $region23: #{tpu_custom_call.1} parent=1 // pred_check_branch
      %74 = sbr.rel (0) target = $region25
    $region24: #{tpu_custom_call.1} parent=1 // pred_region
      %76 = dma.done [#allocation3], 768
    $region25: #{tpu_custom_call.1} parent=1 // pred_fallthru
      _
    // Predicated region
    $region26: #{tpu_custom_call.1} parent=1 // pred_check
      _
    $region27: #{tpu_custom_call.1} parent=1 // pred_check_branch
      %78 = sbr.rel (0) target = $region29
    $region28: #{tpu_custom_call.1} parent=1 // pred_region
      %80 = dma.done [#allocation6], 73728
    $region29: #{tpu_custom_call.1} parent=1 // pred_fallthru
      _
    // Predicated region
    $region30: #{tpu_custom_call.1} parent=1 // pred_check
      _
    $region31: #{tpu_custom_call.1} parent=1 // pred_check_branch
      %82 = sbr.rel (0) target = $region33
    $region32: #{tpu_custom_call.1} parent=1 // pred_region
      %84 = dma.done [#allocation6], 96
    $region33: #{tpu_custom_call.1} parent=1 // pred_fallthru
      _
    // Predicated region
    $region34: #{tpu_custom_call.1} parent=1 // pred_check
      _
    $region35: #{tpu_custom_call.1} parent=1 // pred_check_branch
      %86 = sbr.rel (0) target = $region37
    $region36: #{tpu_custom_call.1} parent=1 // pred_region
      %88 = dma.done [#allocation9], 12288
    $region37: #{tpu_custom_call.1} parent=1 // pred_fallthru
      _
    // Predicated region
    $region38: #{tpu_custom_call.1} parent=1 // pred_check
      _
    $region39: #{tpu_custom_call.1} parent=1 // pred_check_branch
      %90 = sbr.rel (0) target = $region41
    $region40: #{tpu_custom_call.1} parent=1 // pred_region
      %92 = dma.done [#allocation9], 16
    $region41: #{tpu_custom_call.1} parent=1 // pred_fallthru
      _
    %v93 = vld [vmem:[#allocation2] sm:$0xff]
    %v94 = vld [vmem:[#allocation2 + $0x8] sm:$0xff]
    %v95 = vld [vmem:[#allocation2 + $0x10] sm:$0xff]
    %v96 = vld [vmem:[#allocation2 + $0x18] sm:$0xff]
    %v97 = vld [vmem:[#allocation2 + $0x20] sm:$0xff]
    %v98 = vld [vmem:[#allocation2 + $0x28] sm:$0xff]
    %v99 = vld [vmem:[#allocation5] sm:$0xff]
    %v100 = vld [vmem:[#allocation5 + $0x8] sm:$0xff]
    %v101 = vld [vmem:[#allocation5 + $0x10] sm:$0xff]
    %v102 = vld [vmem:[#allocation5 + $0x18] sm:$0xff]
    %v103 = vld [vmem:[#allocation5 + $0x20] sm:$0xff]
    %v104 = vld [vmem:[#allocation5 + $0x28] sm:$0xff]
    %v105 = vld [vmem:[#allocation5 + $0x30] sm:$0xff]
    %v106 = vld [vmem:[#allocation5 + $0x38] sm:$0xff]
    %v107 = vld [vmem:[#allocation5 + $0x40] sm:$0xff]
    %v108 = vld [vmem:[#allocation5 + $0x48] sm:$0xff]
    %v109 = vld [vmem:[#allocation5 + $0x50] sm:$0xff]
    %v110 = vld [vmem:[#allocation5 + $0x58] sm:$0xff]
    %v111 = vld [vmem:[#allocation5 + $0x60] sm:$0xff]
    %v112 = vld [vmem:[#allocation5 + $0x68] sm:$0xff]
    %v113 = vld [vmem:[#allocation5 + $0x70] sm:$0xff]
    %v114 = vld [vmem:[#allocation5 + $0x78] sm:$0xff]
    %v115 = vld [vmem:[#allocation5 + $0x80] sm:$0xff]
    %v116 = vld [vmem:[#allocation5 + $0x88] sm:$0xff]
    %v117 = vld [vmem:[#allocation5 + $0x90] sm:$0xff]
    %v118 = vld [vmem:[#allocation5 + $0x98] sm:$0xff]
    %v119 = vld [vmem:[#allocation5 + $0xa0] sm:$0xff]
    %v120 = vld [vmem:[#allocation5 + $0xa8] sm:$0xff]
    %v121 = vld [vmem:[#allocation5 + $0xb0] sm:$0xff]
    %v122 = vld [vmem:[#allocation5 + $0xb8] sm:$0xff]
    %v123 = vld [vmem:[#allocation5 + $0xc0] sm:$0xff]
    %v124 = vld [vmem:[#allocation5 + $0xc8] sm:$0xff]
    %v125 = vld [vmem:[#allocation5 + $0xd0] sm:$0xff]
    %v126 = vld [vmem:[#allocation5 + $0xd8] sm:$0xff]
    %v127 = vld [vmem:[#allocation5 + $0xe0] sm:$0xff]
    %v128 = vld [vmem:[#allocation5 + $0xe8] sm:$0xff]
    %v129 = vld [vmem:[#allocation5 + $0xf0] sm:$0xff]
    %v130 = vld [vmem:[#allocation5 + $0xf8] sm:$0xff]
    %v131 = vld [vmem:[#allocation5 + $0x100] sm:$0xff]
    %v132 = vld [vmem:[#allocation5 + $0x108] sm:$0xff]
    %v133 = vld [vmem:[#allocation5 + $0x110] sm:$0xff]
    %v134 = vld [vmem:[#allocation5 + $0x118] sm:$0xff]
    %v135 = vld [vmem:[#allocation5 + $0x120] sm:$0xff]
    %v136 = vld [vmem:[#allocation5 + $0x128] sm:$0xff]
    %v137 = vld [vmem:[#allocation5 + $0x130] sm:$0xff]
    %v138 = vld [vmem:[#allocation5 + $0x138] sm:$0xff]
    %v139 = vld [vmem:[#allocation5 + $0x140] sm:$0xff]
    %v140 = vld [vmem:[#allocation5 + $0x148] sm:$0xff]
    %v141 = vld [vmem:[#allocation5 + $0x150] sm:$0xff]
    %v142 = vld [vmem:[#allocation5 + $0x158] sm:$0xff]
    %v143 = vld [vmem:[#allocation5 + $0x160] sm:$0xff]
    %v144 = vld [vmem:[#allocation5 + $0x168] sm:$0xff]
    %v145 = vld [vmem:[#allocation5 + $0x170] sm:$0xff]
    %v146 = vld [vmem:[#allocation5 + $0x178] sm:$0xff]
    %v147 = vld [vmem:[#allocation5 + $0x180] sm:$0xff]
    %v148 = vld [vmem:[#allocation5 + $0x188] sm:$0xff]
    %v149 = vld [vmem:[#allocation5 + $0x190] sm:$0xff]
    %v150 = vld [vmem:[#allocation5 + $0x198] sm:$0xff]
    %v151 = vld [vmem:[#allocation5 + $0x1a0] sm:$0xff]
    %v152 = vld [vmem:[#allocation5 + $0x1a8] sm:$0xff]
    %v153 = vld [vmem:[#allocation5 + $0x1b0] sm:$0xff]
    %v154 = vld [vmem:[#allocation5 + $0x1b8] sm:$0xff]
    %v155 = vld [vmem:[#allocation5 + $0x1c0] sm:$0xff]
    %v156 = vld [vmem:[#allocation5 + $0x1c8] sm:$0xff]
    %v157 = vld [vmem:[#allocation5 + $0x1d0] sm:$0xff]
    %v158 = vld [vmem:[#allocation5 + $0x1d8] sm:$0xff]
    %v159 = vld [vmem:[#allocation5 + $0x1e0] sm:$0xff]
    %v160 = vld [vmem:[#allocation5 + $0x1e8] sm:$0xff]
    %v161 = vld [vmem:[#allocation5 + $0x1f0] sm:$0xff]
    %v162 = vld [vmem:[#allocation5 + $0x1f8] sm:$0xff]
    %v163 = vld [vmem:[#allocation5 + $0x200] sm:$0xff]
    %v164 = vld [vmem:[#allocation5 + $0x208] sm:$0xff]
    %v165 = vld [vmem:[#allocation5 + $0x210] sm:$0xff]
    %v166 = vld [vmem:[#allocation5 + $0x218] sm:$0xff]
    %v167 = vld [vmem:[#allocation5 + $0x220] sm:$0xff]
    %v168 = vld [vmem:[#allocation5 + $0x228] sm:$0xff]
    %v169 = vld [vmem:[#allocation5 + $0x230] sm:$0xff]
    %v170 = vld [vmem:[#allocation5 + $0x238] sm:$0xff]
    %v171 = vld [vmem:[#allocation5 + $0x240] sm:$0xff]
    %v172 = vld [vmem:[#allocation5 + $0x248] sm:$0xff]
    %v173 = vld [vmem:[#allocation5 + $0x250] sm:$0xff]
    %v174 = vld [vmem:[#allocation5 + $0x258] sm:$0xff]
    %v175 = vld [vmem:[#allocation5 + $0x260] sm:$0xff]
    %v176 = vld [vmem:[#allocation5 + $0x268] sm:$0xff]
    %v177 = vld [vmem:[#allocation5 + $0x270] sm:$0xff]
    %v178 = vld [vmem:[#allocation5 + $0x278] sm:$0xff]
    %v179 = vld [vmem:[#allocation5 + $0x280] sm:$0xff]
    %v180 = vld [vmem:[#allocation5 + $0x288] sm:$0xff]
    %v181 = vld [vmem:[#allocation5 + $0x290] sm:$0xff]
    %v182 = vld [vmem:[#allocation5 + $0x298] sm:$0xff]
    %v183 = vld [vmem:[#allocation5 + $0x2a0] sm:$0xff]
    %v184 = vld [vmem:[#allocation5 + $0x2a8] sm:$0xff]
    %v185 = vld [vmem:[#allocation5 + $0x2b0] sm:$0xff]
    %v186 = vld [vmem:[#allocation5 + $0x2b8] sm:$0xff]
    %v187 = vld [vmem:[#allocation5 + $0x2c0] sm:$0xff]
    %v188 = vld [vmem:[#allocation5 + $0x2c8] sm:$0xff]
    %v189 = vld [vmem:[#allocation5 + $0x2d0] sm:$0xff]
    %v190 = vld [vmem:[#allocation5 + $0x2d8] sm:$0xff]
    %v191 = vld [vmem:[#allocation5 + $0x2e0] sm:$0xff]
    %v192 = vld [vmem:[#allocation5 + $0x2e8] sm:$0xff]
    %v193 = vld [vmem:[#allocation5 + $0x2f0] sm:$0xff]
    %v194 = vld [vmem:[#allocation5 + $0x2f8] sm:$0xff]
    %v195 = vld [vmem:[#allocation5 + $0x300] sm:$0xff]
    %v196 = vld [vmem:[#allocation5 + $0x308] sm:$0xff]
    %v197 = vld [vmem:[#allocation5 + $0x310] sm:$0xff]
    %v198 = vld [vmem:[#allocation5 + $0x318] sm:$0xff]
    %v199 = vld [vmem:[#allocation5 + $0x320] sm:$0xff]
    %v200 = vld [vmem:[#allocation5 + $0x328] sm:$0xff]
    %v201 = vld [vmem:[#allocation5 + $0x330] sm:$0xff]
    %v202 = vld [vmem:[#allocation5 + $0x338] sm:$0xff]
    %v203 = vld [vmem:[#allocation5 + $0x340] sm:$0xff]
    %v204 = vld [vmem:[#allocation5 + $0x348] sm:$0xff]
    %v205 = vld [vmem:[#allocation5 + $0x350] sm:$0xff]
    %v206 = vld [vmem:[#allocation5 + $0x358] sm:$0xff]
    %v207 = vld [vmem:[#allocation5 + $0x360] sm:$0xff]
    %v208 = vld [vmem:[#allocation5 + $0x368] sm:$0xff]
    %v209 = vld [vmem:[#allocation5 + $0x370] sm:$0xff]
    %v210 = vld [vmem:[#allocation5 + $0x378] sm:$0xff]
    %v211 = vld [vmem:[#allocation5 + $0x380] sm:$0xff]
    %v212 = vld [vmem:[#allocation5 + $0x388] sm:$0xff]
    %v213 = vld [vmem:[#allocation5 + $0x390] sm:$0xff]
    %v214 = vld [vmem:[#allocation5 + $0x398] sm:$0xff]
    %v215 = vld [vmem:[#allocation5 + $0x3a0] sm:$0xff]
    %v216 = vld [vmem:[#allocation5 + $0x3a8] sm:$0xff]
    %v217 = vld [vmem:[#allocation5 + $0x3b0] sm:$0xff]
    %v218 = vld [vmem:[#allocation5 + $0x3b8] sm:$0xff]
    %v219 = vld [vmem:[#allocation5 + $0x3c0] sm:$0xff]
    %v220 = vld [vmem:[#allocation5 + $0x3c8] sm:$0xff]
    %v221 = vld [vmem:[#allocation5 + $0x3d0] sm:$0xff]
    %v222 = vld [vmem:[#allocation5 + $0x3d8] sm:$0xff]
    %v223 = vld [vmem:[#allocation5 + $0x3e0] sm:$0xff]
    %v224 = vld [vmem:[#allocation5 + $0x3e8] sm:$0xff]
    %v225 = vld [vmem:[#allocation5 + $0x3f0] sm:$0xff]
    %v226 = vld [vmem:[#allocation5 + $0x3f8] sm:$0xff]
    %v227 = vld [vmem:[#allocation5 + $0x400] sm:$0xff]
    %v228 = vld [vmem:[#allocation5 + $0x408] sm:$0xff]
    %v229 = vld [vmem:[#allocation5 + $0x410] sm:$0xff]
    %v230 = vld [vmem:[#allocation5 + $0x418] sm:$0xff]
    %v231 = vld [vmem:[#allocation5 + $0x420] sm:$0xff]
    %v232 = vld [vmem:[#allocation5 + $0x428] sm:$0xff]
    %v233 = vld [vmem:[#allocation5 + $0x430] sm:$0xff]
    %v234 = vld [vmem:[#allocation5 + $0x438] sm:$0xff]
    %v235 = vld [vmem:[#allocation5 + $0x440] sm:$0xff]
    %v236 = vld [vmem:[#allocation5 + $0x448] sm:$0xff]
    %v237 = vld [vmem:[#allocation5 + $0x450] sm:$0xff]
    %v238 = vld [vmem:[#allocation5 + $0x458] sm:$0xff]
    %v239 = vld [vmem:[#allocation5 + $0x460] sm:$0xff]
    %v240 = vld [vmem:[#allocation5 + $0x468] sm:$0xff]
    %v241 = vld [vmem:[#allocation5 + $0x470] sm:$0xff]
    %v242 = vld [vmem:[#allocation5 + $0x478] sm:$0xff]
    %v243 = vld [vmem:[#allocation5 + $0x480] sm:$0xff]
    %v244 = vld [vmem:[#allocation5 + $0x488] sm:$0xff]
    %v245 = vld [vmem:[#allocation5 + $0x490] sm:$0xff]
    %v246 = vld [vmem:[#allocation5 + $0x498] sm:$0xff]
    %v247 = vld [vmem:[#allocation5 + $0x4a0] sm:$0xff]
    %v248 = vld [vmem:[#allocation5 + $0x4a8] sm:$0xff]
    %v249 = vld [vmem:[#allocation5 + $0x4b0] sm:$0xff]
    %v250 = vld [vmem:[#allocation5 + $0x4b8] sm:$0xff]
    %v251 = vld [vmem:[#allocation5 + $0x4c0] sm:$0xff]
    %v252 = vld [vmem:[#allocation5 + $0x4c8] sm:$0xff]
    %v253 = vld [vmem:[#allocation5 + $0x4d0] sm:$0xff]
    %v254 = vld [vmem:[#allocation5 + $0x4d8] sm:$0xff]
    %v255 = vld [vmem:[#allocation5 + $0x4e0] sm:$0xff]
    %v256 = vld [vmem:[#allocation5 + $0x4e8] sm:$0xff]
    %v257 = vld [vmem:[#allocation5 + $0x4f0] sm:$0xff]
    %v258 = vld [vmem:[#allocation5 + $0x4f8] sm:$0xff]
    %v259 = vld [vmem:[#allocation5 + $0x500] sm:$0xff]
    %v260 = vld [vmem:[#allocation5 + $0x508] sm:$0xff]
    %v261 = vld [vmem:[#allocation5 + $0x510] sm:$0xff]
    %v262 = vld [vmem:[#allocation5 + $0x518] sm:$0xff]
    %v263 = vld [vmem:[#allocation5 + $0x520] sm:$0xff]
    %v264 = vld [vmem:[#allocation5 + $0x528] sm:$0xff]
    %v265 = vld [vmem:[#allocation5 + $0x530] sm:$0xff]
    %v266 = vld [vmem:[#allocation5 + $0x538] sm:$0xff]
    %v267 = vld [vmem:[#allocation5 + $0x540] sm:$0xff]
    %v268 = vld [vmem:[#allocation5 + $0x548] sm:$0xff]
    %v269 = vld [vmem:[#allocation5 + $0x550] sm:$0xff]
    %v270 = vld [vmem:[#allocation5 + $0x558] sm:$0xff]
    %v271 = vld [vmem:[#allocation5 + $0x560] sm:$0xff]
    %v272 = vld [vmem:[#allocation5 + $0x568] sm:$0xff]
    %v273 = vld [vmem:[#allocation5 + $0x570] sm:$0xff]
    %v274 = vld [vmem:[#allocation5 + $0x578] sm:$0xff]
    %v275 = vld [vmem:[#allocation5 + $0x580] sm:$0xff]
    %v276 = vld [vmem:[#allocation5 + $0x588] sm:$0xff]
    %v277 = vld [vmem:[#allocation5 + $0x590] sm:$0xff]
    %v278 = vld [vmem:[#allocation5 + $0x598] sm:$0xff]
    %v279 = vld [vmem:[#allocation5 + $0x5a0] sm:$0xff]
    %v280 = vld [vmem:[#allocation5 + $0x5a8] sm:$0xff]
    %v281 = vld [vmem:[#allocation5 + $0x5b0] sm:$0xff]
    %v282 = vld [vmem:[#allocation5 + $0x5b8] sm:$0xff]
    %v283 = vld [vmem:[#allocation5 + $0x5c0] sm:$0xff]
    %v284 = vld [vmem:[#allocation5 + $0x5c8] sm:$0xff]
    %v285 = vld [vmem:[#allocation5 + $0x5d0] sm:$0xff]
    %v286 = vld [vmem:[#allocation5 + $0x5d8] sm:$0xff]
    %v287 = vld [vmem:[#allocation5 + $0x5e0] sm:$0xff]
    %v288 = vld [vmem:[#allocation5 + $0x5e8] sm:$0xff]
    %v289 = vld [vmem:[#allocation5 + $0x5f0] sm:$0xff]
    %v290 = vld [vmem:[#allocation5 + $0x5f8] sm:$0xff]
    %v291 = vld [vmem:[#allocation5 + $0x600] sm:$0xff]
    %v292 = vld [vmem:[#allocation5 + $0x608] sm:$0xff]
    %v293 = vld [vmem:[#allocation5 + $0x610] sm:$0xff]
    %v294 = vld [vmem:[#allocation5 + $0x618] sm:$0xff]
    %v295 = vld [vmem:[#allocation5 + $0x620] sm:$0xff]
    %v296 = vld [vmem:[#allocation5 + $0x628] sm:$0xff]
    %v297 = vld [vmem:[#allocation5 + $0x630] sm:$0xff]
    %v298 = vld [vmem:[#allocation5 + $0x638] sm:$0xff]
    %v299 = vld [vmem:[#allocation5 + $0x640] sm:$0xff]
    %v300 = vld [vmem:[#allocation5 + $0x648] sm:$0xff]
    %v301 = vld [vmem:[#allocation5 + $0x650] sm:$0xff]
    %v302 = vld [vmem:[#allocation5 + $0x658] sm:$0xff]
    %v303 = vld [vmem:[#allocation5 + $0x660] sm:$0xff]
    %v304 = vld [vmem:[#allocation5 + $0x668] sm:$0xff]
    %v305 = vld [vmem:[#allocation5 + $0x670] sm:$0xff]
    %v306 = vld [vmem:[#allocation5 + $0x678] sm:$0xff]
    %v307 = vld [vmem:[#allocation5 + $0x680] sm:$0xff]
    %v308 = vld [vmem:[#allocation5 + $0x688] sm:$0xff]
    %v309 = vld [vmem:[#allocation5 + $0x690] sm:$0xff]
    %v310 = vld [vmem:[#allocation5 + $0x698] sm:$0xff]
    %v311 = vld [vmem:[#allocation5 + $0x6a0] sm:$0xff]
    %v312 = vld [vmem:[#allocation5 + $0x6a8] sm:$0xff]
    %v313 = vld [vmem:[#allocation5 + $0x6b0] sm:$0xff]
    %v314 = vld [vmem:[#allocation5 + $0x6b8] sm:$0xff]
    %v315 = vld [vmem:[#allocation5 + $0x6c0] sm:$0xff]
    %v316 = vld [vmem:[#allocation5 + $0x6c8] sm:$0xff]
    %v317 = vld [vmem:[#allocation5 + $0x6d0] sm:$0xff]
    %v318 = vld [vmem:[#allocation5 + $0x6d8] sm:$0xff]
    %v319 = vld [vmem:[#allocation5 + $0x6e0] sm:$0xff]
    %v320 = vld [vmem:[#allocation5 + $0x6e8] sm:$0xff]
    %v321 = vld [vmem:[#allocation5 + $0x6f0] sm:$0xff]
    %v322 = vld [vmem:[#allocation5 + $0x6f8] sm:$0xff]
    %v323 = vld [vmem:[#allocation5 + $0x700] sm:$0xff]
    %v324 = vld [vmem:[#allocation5 + $0x708] sm:$0xff]
    %v325 = vld [vmem:[#allocation5 + $0x710] sm:$0xff]
    %v326 = vld [vmem:[#allocation5 + $0x718] sm:$0xff]
    %v327 = vld [vmem:[#allocation5 + $0x720] sm:$0xff]
    %v328 = vld [vmem:[#allocation5 + $0x728] sm:$0xff]
    %v329 = vld [vmem:[#allocation5 + $0x730] sm:$0xff]
    %v330 = vld [vmem:[#allocation5 + $0x738] sm:$0xff]
    %v331 = vld [vmem:[#allocation5 + $0x740] sm:$0xff]
    %v332 = vld [vmem:[#allocation5 + $0x748] sm:$0xff]
    %v333 = vld [vmem:[#allocation5 + $0x750] sm:$0xff]
    %v334 = vld [vmem:[#allocation5 + $0x758] sm:$0xff]
    %v335 = vld [vmem:[#allocation5 + $0x760] sm:$0xff]
    %v336 = vld [vmem:[#allocation5 + $0x768] sm:$0xff]
    %v337 = vld [vmem:[#allocation5 + $0x770] sm:$0xff]
    %v338 = vld [vmem:[#allocation5 + $0x778] sm:$0xff]
    %v339 = vld [vmem:[#allocation5 + $0x780] sm:$0xff]
    %v340 = vld [vmem:[#allocation5 + $0x788] sm:$0xff]
    %v341 = vld [vmem:[#allocation5 + $0x790] sm:$0xff]
    %v342 = vld [vmem:[#allocation5 + $0x798] sm:$0xff]
    %v343 = vld [vmem:[#allocation5 + $0x7a0] sm:$0xff]
    %v344 = vld [vmem:[#allocation5 + $0x7a8] sm:$0xff]
    %v345 = vld [vmem:[#allocation5 + $0x7b0] sm:$0xff]
    %v346 = vld [vmem:[#allocation5 + $0x7b8] sm:$0xff]
    %v347 = vld [vmem:[#allocation5 + $0x7c0] sm:$0xff]
    %v348 = vld [vmem:[#allocation5 + $0x7c8] sm:$0xff]
    %v349 = vld [vmem:[#allocation5 + $0x7d0] sm:$0xff]
    %v350 = vld [vmem:[#allocation5 + $0x7d8] sm:$0xff]
    %v351 = vld [vmem:[#allocation5 + $0x7e0] sm:$0xff]
    %v352 = vld [vmem:[#allocation5 + $0x7e8] sm:$0xff]
    %v353 = vld [vmem:[#allocation5 + $0x7f0] sm:$0xff]
    %v354 = vld [vmem:[#allocation5 + $0x7f8] sm:$0xff]
    %v355 = vld [vmem:[#allocation5 + $0x800] sm:$0xff]
    %v356 = vld [vmem:[#allocation5 + $0x808] sm:$0xff]
    %v357 = vld [vmem:[#allocation5 + $0x810] sm:$0xff]
    %v358 = vld [vmem:[#allocation5 + $0x818] sm:$0xff]
    %v359 = vld [vmem:[#allocation5 + $0x820] sm:$0xff]
    %v360 = vld [vmem:[#allocation5 + $0x828] sm:$0xff]
    %v361 = vld [vmem:[#allocation5 + $0x830] sm:$0xff]
    %v362 = vld [vmem:[#allocation5 + $0x838] sm:$0xff]
    %v363 = vld [vmem:[#allocation5 + $0x840] sm:$0xff]
    %v364 = vld [vmem:[#allocation5 + $0x848] sm:$0xff]
    %v365 = vld [vmem:[#allocation5 + $0x850] sm:$0xff]
    %v366 = vld [vmem:[#allocation5 + $0x858] sm:$0xff]
    %v367 = vld [vmem:[#allocation5 + $0x860] sm:$0xff]
    %v368 = vld [vmem:[#allocation5 + $0x868] sm:$0xff]
    %v369 = vld [vmem:[#allocation5 + $0x870] sm:$0xff]
    %v370 = vld [vmem:[#allocation5 + $0x878] sm:$0xff]
    %v371 = vld [vmem:[#allocation5 + $0x880] sm:$0xff]
    %v372 = vld [vmem:[#allocation5 + $0x888] sm:$0xff]
    %v373 = vld [vmem:[#allocation5 + $0x890] sm:$0xff]
    %v374 = vld [vmem:[#allocation5 + $0x898] sm:$0xff]
    %v375 = vld [vmem:[#allocation5 + $0x8a0] sm:$0xff]
    %v376 = vld [vmem:[#allocation5 + $0x8a8] sm:$0xff]
    %v377 = vld [vmem:[#allocation5 + $0x8b0] sm:$0xff]
    %v378 = vld [vmem:[#allocation5 + $0x8b8] sm:$0xff]
    %v379 = vld [vmem:[#allocation5 + $0x8c0] sm:$0xff]
    %v380 = vld [vmem:[#allocation5 + $0x8c8] sm:$0xff]
    %v381 = vld [vmem:[#allocation5 + $0x8d0] sm:$0xff]
    %v382 = vld [vmem:[#allocation5 + $0x8d8] sm:$0xff]
    %v383 = vld [vmem:[#allocation5 + $0x8e0] sm:$0xff]
    %v384 = vld [vmem:[#allocation5 + $0x8e8] sm:$0xff]
    %v385 = vld [vmem:[#allocation5 + $0x8f0] sm:$0xff]
    %v386 = vld [vmem:[#allocation5 + $0x8f8] sm:$0xff]
    %v387 = vld [vmem:[#allocation5 + $0x900] sm:$0xff]
    %v388 = vld [vmem:[#allocation5 + $0x908] sm:$0xff]
    %v389 = vld [vmem:[#allocation5 + $0x910] sm:$0xff]
    %v390 = vld [vmem:[#allocation5 + $0x918] sm:$0xff]
    %v391 = vld [vmem:[#allocation5 + $0x920] sm:$0xff]
    %v392 = vld [vmem:[#allocation5 + $0x928] sm:$0xff]
    %v393 = vld [vmem:[#allocation5 + $0x930] sm:$0xff]
    %v394 = vld [vmem:[#allocation5 + $0x938] sm:$0xff]
    %v395 = vld [vmem:[#allocation5 + $0x940] sm:$0xff]
    %v396 = vld [vmem:[#allocation5 + $0x948] sm:$0xff]
    %v397 = vld [vmem:[#allocation5 + $0x950] sm:$0xff]
    %v398 = vld [vmem:[#allocation5 + $0x958] sm:$0xff]
    %v399 = vld [vmem:[#allocation5 + $0x960] sm:$0xff]
    %v400 = vld [vmem:[#allocation5 + $0x968] sm:$0xff]
    %v401 = vld [vmem:[#allocation5 + $0x970] sm:$0xff]
    %v402 = vld [vmem:[#allocation5 + $0x978] sm:$0xff]
    %v403 = vld [vmem:[#allocation5 + $0x980] sm:$0xff]
    %v404 = vld [vmem:[#allocation5 + $0x988] sm:$0xff]
    %v405 = vld [vmem:[#allocation5 + $0x990] sm:$0xff]
    %v406 = vld [vmem:[#allocation5 + $0x998] sm:$0xff]
    %v407 = vld [vmem:[#allocation5 + $0x9a0] sm:$0xff]
    %v408 = vld [vmem:[#allocation5 + $0x9a8] sm:$0xff]
    %v409 = vld [vmem:[#allocation5 + $0x9b0] sm:$0xff]
    %v410 = vld [vmem:[#allocation5 + $0x9b8] sm:$0xff]
    %v411 = vld [vmem:[#allocation5 + $0x9c0] sm:$0xff]
    %v412 = vld [vmem:[#allocation5 + $0x9c8] sm:$0xff]
    %v413 = vld [vmem:[#allocation5 + $0x9d0] sm:$0xff]
    %v414 = vld [vmem:[#allocation5 + $0x9d8] sm:$0xff]
    %v415 = vld [vmem:[#allocation5 + $0x9e0] sm:$0xff]
    %v416 = vld [vmem:[#allocation5 + $0x9e8] sm:$0xff]
    %v417 = vld [vmem:[#allocation5 + $0x9f0] sm:$0xff]
    %v418 = vld [vmem:[#allocation5 + $0x9f8] sm:$0xff]
    %v419 = vld [vmem:[#allocation5 + $0xa00] sm:$0xff]
    %v420 = vld [vmem:[#allocation5 + $0xa08] sm:$0xff]
    %v421 = vld [vmem:[#allocation5 + $0xa10] sm:$0xff]
    %v422 = vld [vmem:[#allocation5 + $0xa18] sm:$0xff]
    %v423 = vld [vmem:[#allocation5 + $0xa20] sm:$0xff]
    %v424 = vld [vmem:[#allocation5 + $0xa28] sm:$0xff]
    %v425 = vld [vmem:[#allocation5 + $0xa30] sm:$0xff]
    %v426 = vld [vmem:[#allocation5 + $0xa38] sm:$0xff]
    %v427 = vld [vmem:[#allocation5 + $0xa40] sm:$0xff]
    %v428 = vld [vmem:[#allocation5 + $0xa48] sm:$0xff]
    %v429 = vld [vmem:[#allocation5 + $0xa50] sm:$0xff]
    %v430 = vld [vmem:[#allocation5 + $0xa58] sm:$0xff]
    %v431 = vld [vmem:[#allocation5 + $0xa60] sm:$0xff]
    %v432 = vld [vmem:[#allocation5 + $0xa68] sm:$0xff]
    %v433 = vld [vmem:[#allocation5 + $0xa70] sm:$0xff]
    %v434 = vld [vmem:[#allocation5 + $0xa78] sm:$0xff]
    %v435 = vld [vmem:[#allocation5 + $0xa80] sm:$0xff]
    %v436 = vld [vmem:[#allocation5 + $0xa88] sm:$0xff]
    %v437 = vld [vmem:[#allocation5 + $0xa90] sm:$0xff]
    %v438 = vld [vmem:[#allocation5 + $0xa98] sm:$0xff]
    %v439 = vld [vmem:[#allocation5 + $0xaa0] sm:$0xff]
    %v440 = vld [vmem:[#allocation5 + $0xaa8] sm:$0xff]
    %v441 = vld [vmem:[#allocation5 + $0xab0] sm:$0xff]
    %v442 = vld [vmem:[#allocation5 + $0xab8] sm:$0xff]
    %v443 = vld [vmem:[#allocation5 + $0xac0] sm:$0xff]
    %v444 = vld [vmem:[#allocation5 + $0xac8] sm:$0xff]
    %v445 = vld [vmem:[#allocation5 + $0xad0] sm:$0xff]
    %v446 = vld [vmem:[#allocation5 + $0xad8] sm:$0xff]
    %v447 = vld [vmem:[#allocation5 + $0xae0] sm:$0xff]
    %v448 = vld [vmem:[#allocation5 + $0xae8] sm:$0xff]
    %v449 = vld [vmem:[#allocation5 + $0xaf0] sm:$0xff]
    %v450 = vld [vmem:[#allocation5 + $0xaf8] sm:$0xff]
    %v451 = vld [vmem:[#allocation5 + $0xb00] sm:$0xff]
    %v452 = vld [vmem:[#allocation5 + $0xb08] sm:$0xff]
    %v453 = vld [vmem:[#allocation5 + $0xb10] sm:$0xff]
    %v454 = vld [vmem:[#allocation5 + $0xb18] sm:$0xff]
    %v455 = vld [vmem:[#allocation5 + $0xb20] sm:$0xff]
    %v456 = vld [vmem:[#allocation5 + $0xb28] sm:$0xff]
    %v457 = vld [vmem:[#allocation5 + $0xb30] sm:$0xff]
    %v458 = vld [vmem:[#allocation5 + $0xb38] sm:$0xff]
    %v459 = vld [vmem:[#allocation5 + $0xb40] sm:$0xff]
    %v460 = vld [vmem:[#allocation5 + $0xb48] sm:$0xff]
    %v461 = vld [vmem:[#allocation5 + $0xb50] sm:$0xff]
    %v462 = vld [vmem:[#allocation5 + $0xb58] sm:$0xff]
    %v463 = vld [vmem:[#allocation5 + $0xb60] sm:$0xff]
    %v464 = vld [vmem:[#allocation5 + $0xb68] sm:$0xff]
    %v465 = vld [vmem:[#allocation5 + $0xb70] sm:$0xff]
    %v466 = vld [vmem:[#allocation5 + $0xb78] sm:$0xff]
    %v467 = vld [vmem:[#allocation5 + $0xb80] sm:$0xff]
    %v468 = vld [vmem:[#allocation5 + $0xb88] sm:$0xff]
    %v469 = vld [vmem:[#allocation5 + $0xb90] sm:$0xff]
    %v470 = vld [vmem:[#allocation5 + $0xb98] sm:$0xff]
    %v471 = vld [vmem:[#allocation5 + $0xba0] sm:$0xff]
    %v472 = vld [vmem:[#allocation5 + $0xba8] sm:$0xff]
    %v473 = vld [vmem:[#allocation5 + $0xbb0] sm:$0xff]
    %v474 = vld [vmem:[#allocation5 + $0xbb8] sm:$0xff]
    %v475 = vld [vmem:[#allocation5 + $0xbc0] sm:$0xff]
    %v476 = vld [vmem:[#allocation5 + $0xbc8] sm:$0xff]
    %v477 = vld [vmem:[#allocation5 + $0xbd0] sm:$0xff]
    %v478 = vld [vmem:[#allocation5 + $0xbd8] sm:$0xff]
    %v479 = vld [vmem:[#allocation5 + $0xbe0] sm:$0xff]
    %v480 = vld [vmem:[#allocation5 + $0xbe8] sm:$0xff]
    %v481 = vld [vmem:[#allocation5 + $0xbf0] sm:$0xff]
    %v482 = vld [vmem:[#allocation5 + $0xbf8] sm:$0xff]
    %v483 = vld [vmem:[#allocation5 + $0xc00] sm:$0xff]
    %v484 = vld [vmem:[#allocation5 + $0xc08] sm:$0xff]
    %v485 = vld [vmem:[#allocation5 + $0xc10] sm:$0xff]
    %v486 = vld [vmem:[#allocation5 + $0xc18] sm:$0xff]
    %v487 = vld [vmem:[#allocation5 + $0xc20] sm:$0xff]
    %v488 = vld [vmem:[#allocation5 + $0xc28] sm:$0xff]
    %v489 = vld [vmem:[#allocation5 + $0xc30] sm:$0xff]
    %v490 = vld [vmem:[#allocation5 + $0xc38] sm:$0xff]
    %v491 = vld [vmem:[#allocation5 + $0xc40] sm:$0xff]
    %v492 = vld [vmem:[#allocation5 + $0xc48] sm:$0xff]
    %v493 = vld [vmem:[#allocation5 + $0xc50] sm:$0xff]
    %v494 = vld [vmem:[#allocation5 + $0xc58] sm:$0xff]
    %v495 = vld [vmem:[#allocation5 + $0xc60] sm:$0xff]
    %v496 = vld [vmem:[#allocation5 + $0xc68] sm:$0xff]
    %v497 = vld [vmem:[#allocation5 + $0xc70] sm:$0xff]
    %v498 = vld [vmem:[#allocation5 + $0xc78] sm:$0xff]
    %v499 = vld [vmem:[#allocation5 + $0xc80] sm:$0xff]
    %v500 = vld [vmem:[#allocation5 + $0xc88] sm:$0xff]
    %v501 = vld [vmem:[#allocation5 + $0xc90] sm:$0xff]
    %v502 = vld [vmem:[#allocation5 + $0xc98] sm:$0xff]
    %v503 = vld [vmem:[#allocation5 + $0xca0] sm:$0xff]
    %v504 = vld [vmem:[#allocation5 + $0xca8] sm:$0xff]
    %v505 = vld [vmem:[#allocation5 + $0xcb0] sm:$0xff]
    %v506 = vld [vmem:[#allocation5 + $0xcb8] sm:$0xff]
    %v507 = vld [vmem:[#allocation5 + $0xcc0] sm:$0xff]
    %v508 = vld [vmem:[#allocation5 + $0xcc8] sm:$0xff]
    %v509 = vld [vmem:[#allocation5 + $0xcd0] sm:$0xff]
    %v510 = vld [vmem:[#allocation5 + $0xcd8] sm:$0xff]
    %v511 = vld [vmem:[#allocation5 + $0xce0] sm:$0xff]
    %v512 = vld [vmem:[#allocation5 + $0xce8] sm:$0xff]
    %v513 = vld [vmem:[#allocation5 + $0xcf0] sm:$0xff]
    %v514 = vld [vmem:[#allocation5 + $0xcf8] sm:$0xff]
    %v515 = vld [vmem:[#allocation5 + $0xd00] sm:$0xff]
    %v516 = vld [vmem:[#allocation5 + $0xd08] sm:$0xff]
    %v517 = vld [vmem:[#allocation5 + $0xd10] sm:$0xff]
    %v518 = vld [vmem:[#allocation5 + $0xd18] sm:$0xff]
    %v519 = vld [vmem:[#allocation5 + $0xd20] sm:$0xff]
    %v520 = vld [vmem:[#allocation5 + $0xd28] sm:$0xff]
    %v521 = vld [vmem:[#allocation5 + $0xd30] sm:$0xff]
    %v522 = vld [vmem:[#allocation5 + $0xd38] sm:$0xff]
    %v523 = vld [vmem:[#allocation5 + $0xd40] sm:$0xff]
    %v524 = vld [vmem:[#allocation5 + $0xd48] sm:$0xff]
    %v525 = vld [vmem:[#allocation5 + $0xd50] sm:$0xff]
    %v526 = vld [vmem:[#allocation5 + $0xd58] sm:$0xff]
    %v527 = vld [vmem:[#allocation5 + $0xd60] sm:$0xff]
    %v528 = vld [vmem:[#allocation5 + $0xd68] sm:$0xff]
    %v529 = vld [vmem:[#allocation5 + $0xd70] sm:$0xff]
    %v530 = vld [vmem:[#allocation5 + $0xd78] sm:$0xff]
    %v531 = vld [vmem:[#allocation5 + $0xd80] sm:$0xff]
    %v532 = vld [vmem:[#allocation5 + $0xd88] sm:$0xff]
    %v533 = vld [vmem:[#allocation5 + $0xd90] sm:$0xff]
    %v534 = vld [vmem:[#allocation5 + $0xd98] sm:$0xff]
    %v535 = vld [vmem:[#allocation5 + $0xda0] sm:$0xff]
    %v536 = vld [vmem:[#allocation5 + $0xda8] sm:$0xff]
    %v537 = vld [vmem:[#allocation5 + $0xdb0] sm:$0xff]
    %v538 = vld [vmem:[#allocation5 + $0xdb8] sm:$0xff]
    %v539 = vld [vmem:[#allocation5 + $0xdc0] sm:$0xff]
    %v540 = vld [vmem:[#allocation5 + $0xdc8] sm:$0xff]
    %v541 = vld [vmem:[#allocation5 + $0xdd0] sm:$0xff]
    %v542 = vld [vmem:[#allocation5 + $0xdd8] sm:$0xff]
    %v543 = vld [vmem:[#allocation5 + $0xde0] sm:$0xff]
    %v544 = vld [vmem:[#allocation5 + $0xde8] sm:$0xff]
    %v545 = vld [vmem:[#allocation5 + $0xdf0] sm:$0xff]
    %v546 = vld [vmem:[#allocation5 + $0xdf8] sm:$0xff]
    %v547 = vld [vmem:[#allocation5 + $0xe00] sm:$0xff]
    %v548 = vld [vmem:[#allocation5 + $0xe08] sm:$0xff]
    %v549 = vld [vmem:[#allocation5 + $0xe10] sm:$0xff]
    %v550 = vld [vmem:[#allocation5 + $0xe18] sm:$0xff]
    %v551 = vld [vmem:[#allocation5 + $0xe20] sm:$0xff]
    %v552 = vld [vmem:[#allocation5 + $0xe28] sm:$0xff]
    %v553 = vld [vmem:[#allocation5 + $0xe30] sm:$0xff]
    %v554 = vld [vmem:[#allocation5 + $0xe38] sm:$0xff]
    %v555 = vld [vmem:[#allocation5 + $0xe40] sm:$0xff]
    %v556 = vld [vmem:[#allocation5 + $0xe48] sm:$0xff]
    %v557 = vld [vmem:[#allocation5 + $0xe50] sm:$0xff]
    %v558 = vld [vmem:[#allocation5 + $0xe58] sm:$0xff]
    %v559 = vld [vmem:[#allocation5 + $0xe60] sm:$0xff]
    %v560 = vld [vmem:[#allocation5 + $0xe68] sm:$0xff]
    %v561 = vld [vmem:[#allocation5 + $0xe70] sm:$0xff]
    %v562 = vld [vmem:[#allocation5 + $0xe78] sm:$0xff]
    %v563 = vld [vmem:[#allocation5 + $0xe80] sm:$0xff]
    %v564 = vld [vmem:[#allocation5 + $0xe88] sm:$0xff]
    %v565 = vld [vmem:[#allocation5 + $0xe90] sm:$0xff]
    %v566 = vld [vmem:[#allocation5 + $0xe98] sm:$0xff]
    %v567 = vld [vmem:[#allocation5 + $0xea0] sm:$0xff]
    %v568 = vld [vmem:[#allocation5 + $0xea8] sm:$0xff]
    %v569 = vld [vmem:[#allocation5 + $0xeb0] sm:$0xff]
    %v570 = vld [vmem:[#allocation5 + $0xeb8] sm:$0xff]
    %v571 = vld [vmem:[#allocation5 + $0xec0] sm:$0xff]
    %v572 = vld [vmem:[#allocation5 + $0xec8] sm:$0xff]
    %v573 = vld [vmem:[#allocation5 + $0xed0] sm:$0xff]
    %v574 = vld [vmem:[#allocation5 + $0xed8] sm:$0xff]
    %v575 = vld [vmem:[#allocation5 + $0xee0] sm:$0xff]
    %v576 = vld [vmem:[#allocation5 + $0xee8] sm:$0xff]
    %v577 = vld [vmem:[#allocation5 + $0xef0] sm:$0xff]
    %v578 = vld [vmem:[#allocation5 + $0xef8] sm:$0xff]
    %v579 = vld [vmem:[#allocation5 + $0xf00] sm:$0xff]
    %v580 = vld [vmem:[#allocation5 + $0xf08] sm:$0xff]
    %v581 = vld [vmem:[#allocation5 + $0xf10] sm:$0xff]
    %v582 = vld [vmem:[#allocation5 + $0xf18] sm:$0xff]
    %v583 = vld [vmem:[#allocation5 + $0xf20] sm:$0xff]
    %v584 = vld [vmem:[#allocation5 + $0xf28] sm:$0xff]
    %v585 = vld [vmem:[#allocation5 + $0xf30] sm:$0xff]
    %v586 = vld [vmem:[#allocation5 + $0xf38] sm:$0xff]
    %v587 = vld [vmem:[#allocation5 + $0xf40] sm:$0xff]
    %v588 = vld [vmem:[#allocation5 + $0xf48] sm:$0xff]
    %v589 = vld [vmem:[#allocation5 + $0xf50] sm:$0xff]
    %v590 = vld [vmem:[#allocation5 + $0xf58] sm:$0xff]
    %v591 = vld [vmem:[#allocation5 + $0xf60] sm:$0xff]
    %v592 = vld [vmem:[#allocation5 + $0xf68] sm:$0xff]
    %v593 = vld [vmem:[#allocation5 + $0xf70] sm:$0xff]
    %v594 = vld [vmem:[#allocation5 + $0xf78] sm:$0xff]
    %v595 = vld [vmem:[#allocation5 + $0xf80] sm:$0xff]
    %v596 = vld [vmem:[#allocation5 + $0xf88] sm:$0xff]
    %v597 = vld [vmem:[#allocation5 + $0xf90] sm:$0xff]
    %v598 = vld [vmem:[#allocation5 + $0xf98] sm:$0xff]
    %v599 = vld [vmem:[#allocation5 + $0xfa0] sm:$0xff]
    %v600 = vld [vmem:[#allocation5 + $0xfa8] sm:$0xff]
    %v601 = vld [vmem:[#allocation5 + $0xfb0] sm:$0xff]
    %v602 = vld [vmem:[#allocation5 + $0xfb8] sm:$0xff]
    %v603 = vld [vmem:[#allocation5 + $0xfc0] sm:$0xff]
    %v604 = vld [vmem:[#allocation5 + $0xfc8] sm:$0xff]
    %v605 = vld [vmem:[#allocation5 + $0xfd0] sm:$0xff]
    %v606 = vld [vmem:[#allocation5 + $0xfd8] sm:$0xff]
    %v607 = vld [vmem:[#allocation5 + $0xfe0] sm:$0xff]
    %v608 = vld [vmem:[#allocation5 + $0xfe8] sm:$0xff]
    %v609 = vld [vmem:[#allocation5 + $0xff0] sm:$0xff]
    %v610 = vld [vmem:[#allocation5 + $0xff8] sm:$0xff]
    %v611 = vld [vmem:[#allocation5 + $0x1000] sm:$0xff]
    %v612 = vld [vmem:[#allocation5 + $0x1008] sm:$0xff]
    %v613 = vld [vmem:[#allocation5 + $0x1010] sm:$0xff]
    %v614 = vld [vmem:[#allocation5 + $0x1018] sm:$0xff]
    %v615 = vld [vmem:[#allocation5 + $0x1020] sm:$0xff]
    %v616 = vld [vmem:[#allocation5 + $0x1028] sm:$0xff]
    %v617 = vld [vmem:[#allocation5 + $0x1030] sm:$0xff]
    %v618 = vld [vmem:[#allocation5 + $0x1038] sm:$0xff]
    %v619 = vld [vmem:[#allocation5 + $0x1040] sm:$0xff]
    %v620 = vld [vmem:[#allocation5 + $0x1048] sm:$0xff]
    %v621 = vld [vmem:[#allocation5 + $0x1050] sm:$0xff]
    %v622 = vld [vmem:[#allocation5 + $0x1058] sm:$0xff]
    %v623 = vld [vmem:[#allocation5 + $0x1060] sm:$0xff]
    %v624 = vld [vmem:[#allocation5 + $0x1068] sm:$0xff]
    %v625 = vld [vmem:[#allocation5 + $0x1070] sm:$0xff]
    %v626 = vld [vmem:[#allocation5 + $0x1078] sm:$0xff]
    %v627 = vld [vmem:[#allocation5 + $0x1080] sm:$0xff]
    %v628 = vld [vmem:[#allocation5 + $0x1088] sm:$0xff]
    %v629 = vld [vmem:[#allocation5 + $0x1090] sm:$0xff]
    %v630 = vld [vmem:[#allocation5 + $0x1098] sm:$0xff]
    %v631 = vld [vmem:[#allocation5 + $0x10a0] sm:$0xff]
    %v632 = vld [vmem:[#allocation5 + $0x10a8] sm:$0xff]
    %v633 = vld [vmem:[#allocation5 + $0x10b0] sm:$0xff]
    %v634 = vld [vmem:[#allocation5 + $0x10b8] sm:$0xff]
    %v635 = vld [vmem:[#allocation5 + $0x10c0] sm:$0xff]
    %v636 = vld [vmem:[#allocation5 + $0x10c8] sm:$0xff]
    %v637 = vld [vmem:[#allocation5 + $0x10d0] sm:$0xff]
    %v638 = vld [vmem:[#allocation5 + $0x10d8] sm:$0xff]
    %v639 = vld [vmem:[#allocation5 + $0x10e0] sm:$0xff]
    %v640 = vld [vmem:[#allocation5 + $0x10e8] sm:$0xff]
    %v641 = vld [vmem:[#allocation5 + $0x10f0] sm:$0xff]
    %v642 = vld [vmem:[#allocation5 + $0x10f8] sm:$0xff]
    %v643 = vld [vmem:[#allocation5 + $0x1100] sm:$0xff]
    %v644 = vld [vmem:[#allocation5 + $0x1108] sm:$0xff]
    %v645 = vld [vmem:[#allocation5 + $0x1110] sm:$0xff]
    %v646 = vld [vmem:[#allocation5 + $0x1118] sm:$0xff]
    %v647 = vld [vmem:[#allocation5 + $0x1120] sm:$0xff]
    %v648 = vld [vmem:[#allocation5 + $0x1128] sm:$0xff]
    %v649 = vld [vmem:[#allocation5 + $0x1130] sm:$0xff]
    %v650 = vld [vmem:[#allocation5 + $0x1138] sm:$0xff]
    %v651 = vld [vmem:[#allocation5 + $0x1140] sm:$0xff]
    %v652 = vld [vmem:[#allocation5 + $0x1148] sm:$0xff]
    %v653 = vld [vmem:[#allocation5 + $0x1150] sm:$0xff]
    %v654 = vld [vmem:[#allocation5 + $0x1158] sm:$0xff]
    %v655 = vld [vmem:[#allocation5 + $0x1160] sm:$0xff]
    %v656 = vld [vmem:[#allocation5 + $0x1168] sm:$0xff]
    %v657 = vld [vmem:[#allocation5 + $0x1170] sm:$0xff]
    %v658 = vld [vmem:[#allocation5 + $0x1178] sm:$0xff]
    %v659 = vld [vmem:[#allocation5 + $0x1180] sm:$0xff]
    %v660 = vld [vmem:[#allocation5 + $0x1188] sm:$0xff]
    %v661 = vld [vmem:[#allocation5 + $0x1190] sm:$0xff]
    %v662 = vld [vmem:[#allocation5 + $0x1198] sm:$0xff]
    %v663 = vld [vmem:[#allocation5 + $0x11a0] sm:$0xff]
    %v664 = vld [vmem:[#allocation5 + $0x11a8] sm:$0xff]
    %v665 = vld [vmem:[#allocation5 + $0x11b0] sm:$0xff]
    %v666 = vld [vmem:[#allocation5 + $0x11b8] sm:$0xff]
    %v667 = vld [vmem:[#allocation5 + $0x11c0] sm:$0xff]
    %v668 = vld [vmem:[#allocation5 + $0x11c8] sm:$0xff]
    %v669 = vld [vmem:[#allocation5 + $0x11d0] sm:$0xff]
    %v670 = vld [vmem:[#allocation5 + $0x11d8] sm:$0xff]
    %v671 = vld [vmem:[#allocation5 + $0x11e0] sm:$0xff]
    %v672 = vld [vmem:[#allocation5 + $0x11e8] sm:$0xff]
    %v673 = vld [vmem:[#allocation5 + $0x11f0] sm:$0xff]
    %v674 = vld [vmem:[#allocation5 + $0x11f8] sm:$0xff]
    %v675 = vld [vmem:[#allocation7] sm:$0x3f]
    %v677 = vperm.slane %v675, 0
    %v678 = vperm.slane %v675, 1
    %v679 = vperm.slane %v675, 2
    %v680 = vperm.slane %v675, 3
    %v681 = vperm.slane %v675, 4
    %v682 = vperm.slane %v675, 5
    %689 = vmatpush.msra.mxu0 %v189
    %690 = vmatpush.msra.mxu0 %v183
    %691 = vmatpush.msra.mxu0 %v177
    %692 = vmatpush.msra.mxu0 %v171
    %693 = vmatpush.msra.mxu0 %v165
    %694 = vmatpush.msra.mxu0 %v159
    %695 = vmatpush.msra.mxu0 %v153
    %696 = vmatpush.msra.mxu0 %v147
    %697 = vmatpush.msra.mxu0 %v141
    %698 = vmatpush.msra.mxu0 %v135
    %699 = vmatpush.msra.mxu0 %v129
    %700 = vmatpush.msra.mxu0 %v123
    %701 = vmatpush.msra.mxu0 %v117
    %702 = vmatpush.msra.mxu0 %v111
    %703 = vmatpush.msra.mxu0 %v105
    %704 = vmatpush.msra.mxu0 %v99
    %705 = vmatmul.f32.gmra.mxu0 %v93
    %v706 = vpop.f32.mrf.mxu0
    %v707 = vadd.f32 %v677, %v706
    %708 = vdwg.mxu0
    %709 = vmatpush.msra.mxu0 %v285
    %710 = vmatpush.msra.mxu0 %v279
    %711 = vmatpush.msra.mxu0 %v273
    %712 = vmatpush.msra.mxu0 %v267
    %713 = vmatpush.msra.mxu0 %v261
    %714 = vmatpush.msra.mxu0 %v255
    %715 = vmatpush.msra.mxu0 %v249
    %716 = vmatpush.msra.mxu0 %v243
    %717 = vmatpush.msra.mxu0 %v237
    %718 = vmatpush.msra.mxu0 %v231
    %719 = vmatpush.msra.mxu0 %v225
    %720 = vmatpush.msra.mxu0 %v219
    %721 = vmatpush.msra.mxu0 %v213
    %722 = vmatpush.msra.mxu0 %v207
    %723 = vmatpush.msra.mxu0 %v201
    %724 = vmatpush.msra.mxu0 %v195
    %725 = vmatmul.f32.gmra.mxu0 %v94
    %v726 = vpop.f32.mrf.mxu0
    %v727 = vadd.f32 %v707, %v726
    %728 = vdwg.mxu0
    %729 = vmatpush.msra.mxu0 %v381
    %730 = vmatpush.msra.mxu0 %v375
    %731 = vmatpush.msra.mxu0 %v369
    %732 = vmatpush.msra.mxu0 %v363
    %733 = vmatpush.msra.mxu0 %v357
    %734 = vmatpush.msra.mxu0 %v351
    %735 = vmatpush.msra.mxu0 %v345
    %736 = vmatpush.msra.mxu0 %v339
    %737 = vmatpush.msra.mxu0 %v333
    %738 = vmatpush.msra.mxu0 %v327
    %739 = vmatpush.msra.mxu0 %v321
    %740 = vmatpush.msra.mxu0 %v315
    %741 = vmatpush.msra.mxu0 %v309
    %742 = vmatpush.msra.mxu0 %v303
    %743 = vmatpush.msra.mxu0 %v297
    %744 = vmatpush.msra.mxu0 %v291
    %745 = vmatmul.f32.gmra.mxu0 %v95
    %v746 = vpop.f32.mrf.mxu0
    %v747 = vadd.f32 %v727, %v746
    %748 = vdwg.mxu0
    %749 = vmatpush.msra.mxu0 %v477
    %750 = vmatpush.msra.mxu0 %v471
    %751 = vmatpush.msra.mxu0 %v465
    %752 = vmatpush.msra.mxu0 %v459
    %753 = vmatpush.msra.mxu0 %v453
    %754 = vmatpush.msra.mxu0 %v447
    %755 = vmatpush.msra.mxu0 %v441
    %756 = vmatpush.msra.mxu0 %v435
    %757 = vmatpush.msra.mxu0 %v429
    %758 = vmatpush.msra.mxu0 %v423
    %759 = vmatpush.msra.mxu0 %v417
    %760 = vmatpush.msra.mxu0 %v411
    %761 = vmatpush.msra.mxu0 %v405
    %762 = vmatpush.msra.mxu0 %v399
    %763 = vmatpush.msra.mxu0 %v393
    %764 = vmatpush.msra.mxu0 %v387
    %765 = vmatmul.f32.gmra.mxu0 %v96
    %v766 = vpop.f32.mrf.mxu0
    %v767 = vadd.f32 %v747, %v766
    %768 = vdwg.mxu0
    %769 = vmatpush.msra.mxu0 %v573
    %770 = vmatpush.msra.mxu0 %v567
    %771 = vmatpush.msra.mxu0 %v561
    %772 = vmatpush.msra.mxu0 %v555
    %773 = vmatpush.msra.mxu0 %v549
    %774 = vmatpush.msra.mxu0 %v543
    %775 = vmatpush.msra.mxu0 %v537
    %776 = vmatpush.msra.mxu0 %v531
    %777 = vmatpush.msra.mxu0 %v525
    %778 = vmatpush.msra.mxu0 %v519
    %779 = vmatpush.msra.mxu0 %v513
    %780 = vmatpush.msra.mxu0 %v507
    %781 = vmatpush.msra.mxu0 %v501
    %782 = vmatpush.msra.mxu0 %v495
    %783 = vmatpush.msra.mxu0 %v489
    %784 = vmatpush.msra.mxu0 %v483
    %785 = vmatmul.f32.gmra.mxu0 %v97
    %v786 = vpop.f32.mrf.mxu0
    %v787 = vadd.f32 %v767, %v786
    %788 = vdwg.mxu0
    %789 = vmatpush.msra.mxu0 %v669
    %790 = vmatpush.msra.mxu0 %v663
    %791 = vmatpush.msra.mxu0 %v657
    %792 = vmatpush.msra.mxu0 %v651
    %793 = vmatpush.msra.mxu0 %v645
    %794 = vmatpush.msra.mxu0 %v639
    %795 = vmatpush.msra.mxu0 %v633
    %796 = vmatpush.msra.mxu0 %v627
    %797 = vmatpush.msra.mxu0 %v621
    %798 = vmatpush.msra.mxu0 %v615
    %799 = vmatpush.msra.mxu0 %v609
    %800 = vmatpush.msra.mxu0 %v603
    %801 = vmatpush.msra.mxu0 %v597
    %802 = vmatpush.msra.mxu0 %v591
    %803 = vmatpush.msra.mxu0 %v585
    %804 = vmatpush.msra.mxu0 %v579
    %805 = vmatmul.f32.gmra.mxu0 %v98
    %v806 = vpop.f32.mrf.mxu0
    %v807 = vadd.f32 %v787, %v806
    %808 = vdwg.mxu0
    %809 = vmatpush.msra.mxu0 %v190
    %810 = vmatpush.msra.mxu0 %v184
    %811 = vmatpush.msra.mxu0 %v178
    %812 = vmatpush.msra.mxu0 %v172
    %813 = vmatpush.msra.mxu0 %v166
    %814 = vmatpush.msra.mxu0 %v160
    %815 = vmatpush.msra.mxu0 %v154
    %816 = vmatpush.msra.mxu0 %v148
    %817 = vmatpush.msra.mxu0 %v142
    %818 = vmatpush.msra.mxu0 %v136
    %819 = vmatpush.msra.mxu0 %v130
    %820 = vmatpush.msra.mxu0 %v124
    %821 = vmatpush.msra.mxu0 %v118
    %822 = vmatpush.msra.mxu0 %v112
    %823 = vmatpush.msra.mxu0 %v106
    %824 = vmatpush.msra.mxu0 %v100
    %825 = vmatmul.f32.gmra.mxu0 %v93
    %v826 = vpop.f32.mrf.mxu0
    %v827 = vadd.f32 %v678, %v826
    %828 = vdwg.mxu0
    %829 = vmatpush.msra.mxu0 %v286
    %830 = vmatpush.msra.mxu0 %v280
    %831 = vmatpush.msra.mxu0 %v274
    %832 = vmatpush.msra.mxu0 %v268
    %833 = vmatpush.msra.mxu0 %v262
    %834 = vmatpush.msra.mxu0 %v256
    %835 = vmatpush.msra.mxu0 %v250
    %836 = vmatpush.msra.mxu0 %v244
    %837 = vmatpush.msra.mxu0 %v238
    %838 = vmatpush.msra.mxu0 %v232
    %839 = vmatpush.msra.mxu0 %v226
    %840 = vmatpush.msra.mxu0 %v220
    %841 = vmatpush.msra.mxu0 %v214
    %842 = vmatpush.msra.mxu0 %v208
    %843 = vmatpush.msra.mxu0 %v202
    %844 = vmatpush.msra.mxu0 %v196
    %845 = vmatmul.f32.gmra.mxu0 %v94
    %v846 = vpop.f32.mrf.mxu0
    %v847 = vadd.f32 %v827, %v846
    %848 = vdwg.mxu0
    %849 = vmatpush.msra.mxu0 %v382
    %850 = vmatpush.msra.mxu0 %v376
    %851 = vmatpush.msra.mxu0 %v370
    %852 = vmatpush.msra.mxu0 %v364
    %853 = vmatpush.msra.mxu0 %v358
    %854 = vmatpush.msra.mxu0 %v352
    %855 = vmatpush.msra.mxu0 %v346
    %856 = vmatpush.msra.mxu0 %v340
    %857 = vmatpush.msra.mxu0 %v334
    %858 = vmatpush.msra.mxu0 %v328
    %859 = vmatpush.msra.mxu0 %v322
    %860 = vmatpush.msra.mxu0 %v316
    %861 = vmatpush.msra.mxu0 %v310
    %862 = vmatpush.msra.mxu0 %v304
    %863 = vmatpush.msra.mxu0 %v298
    %864 = vmatpush.msra.mxu0 %v292
    %865 = vmatmul.f32.gmra.mxu0 %v95
    %v866 = vpop.f32.mrf.mxu0
    %v867 = vadd.f32 %v847, %v866
    %868 = vdwg.mxu0
    %869 = vmatpush.msra.mxu0 %v478
    %870 = vmatpush.msra.mxu0 %v472
    %871 = vmatpush.msra.mxu0 %v466
    %872 = vmatpush.msra.mxu0 %v460
    %873 = vmatpush.msra.mxu0 %v454
    %874 = vmatpush.msra.mxu0 %v448
    %875 = vmatpush.msra.mxu0 %v442
    %876 = vmatpush.msra.mxu0 %v436
    %877 = vmatpush.msra.mxu0 %v430
    %878 = vmatpush.msra.mxu0 %v424
    %879 = vmatpush.msra.mxu0 %v418
    %880 = vmatpush.msra.mxu0 %v412
    %881 = vmatpush.msra.mxu0 %v406
    %882 = vmatpush.msra.mxu0 %v400
    %883 = vmatpush.msra.mxu0 %v394
    %884 = vmatpush.msra.mxu0 %v388
    %885 = vmatmul.f32.gmra.mxu0 %v96
    %v886 = vpop.f32.mrf.mxu0
    %v887 = vadd.f32 %v867, %v886
    %888 = vdwg.mxu0
    %889 = vmatpush.msra.mxu0 %v574
    %890 = vmatpush.msra.mxu0 %v568
    %891 = vmatpush.msra.mxu0 %v562
    %892 = vmatpush.msra.mxu0 %v556
    %893 = vmatpush.msra.mxu0 %v550
    %894 = vmatpush.msra.mxu0 %v544
    %895 = vmatpush.msra.mxu0 %v538
    %896 = vmatpush.msra.mxu0 %v532
    %897 = vmatpush.msra.mxu0 %v526
    %898 = vmatpush.msra.mxu0 %v520
    %899 = vmatpush.msra.mxu0 %v514
    %900 = vmatpush.msra.mxu0 %v508
    %901 = vmatpush.msra.mxu0 %v502
    %902 = vmatpush.msra.mxu0 %v496
    %903 = vmatpush.msra.mxu0 %v490
    %904 = vmatpush.msra.mxu0 %v484
    %905 = vmatmul.f32.gmra.mxu0 %v97
    %v906 = vpop.f32.mrf.mxu0
    %v907 = vadd.f32 %v887, %v906
    %908 = vdwg.mxu0
    %909 = vmatpush.msra.mxu0 %v670
    %910 = vmatpush.msra.mxu0 %v664
    %911 = vmatpush.msra.mxu0 %v658
    %912 = vmatpush.msra.mxu0 %v652
    %913 = vmatpush.msra.mxu0 %v646
    %914 = vmatpush.msra.mxu0 %v640
    %915 = vmatpush.msra.mxu0 %v634
    %916 = vmatpush.msra.mxu0 %v628
    %917 = vmatpush.msra.mxu0 %v622
    %918 = vmatpush.msra.mxu0 %v616
    %919 = vmatpush.msra.mxu0 %v610
    %920 = vmatpush.msra.mxu0 %v604
    %921 = vmatpush.msra.mxu0 %v598
    %922 = vmatpush.msra.mxu0 %v592
    %923 = vmatpush.msra.mxu0 %v586
    %924 = vmatpush.msra.mxu0 %v580
    %925 = vmatmul.f32.gmra.mxu0 %v98
    %v926 = vpop.f32.mrf.mxu0
    %v927 = vadd.f32 %v907, %v926
    %928 = vdwg.mxu0
    %929 = vmatpush.msra.mxu0 %v191
    %930 = vmatpush.msra.mxu0 %v185
    %931 = vmatpush.msra.mxu0 %v179
    %932 = vmatpush.msra.mxu0 %v173
    %933 = vmatpush.msra.mxu0 %v167
    %934 = vmatpush.msra.mxu0 %v161
    %935 = vmatpush.msra.mxu0 %v155
    %936 = vmatpush.msra.mxu0 %v149
    %937 = vmatpush.msra.mxu0 %v143
    %938 = vmatpush.msra.mxu0 %v137
    %939 = vmatpush.msra.mxu0 %v131
    %940 = vmatpush.msra.mxu0 %v125
    %941 = vmatpush.msra.mxu0 %v119
    %942 = vmatpush.msra.mxu0 %v113
    %943 = vmatpush.msra.mxu0 %v107
    %944 = vmatpush.msra.mxu0 %v101
    %945 = vmatmul.f32.gmra.mxu0 %v93
    %v946 = vpop.f32.mrf.mxu0
    %v947 = vadd.f32 %v679, %v946
    %948 = vdwg.mxu0
    %949 = vmatpush.msra.mxu0 %v287
    %950 = vmatpush.msra.mxu0 %v281
    %951 = vmatpush.msra.mxu0 %v275
    %952 = vmatpush.msra.mxu0 %v269
    %953 = vmatpush.msra.mxu0 %v263
    %954 = vmatpush.msra.mxu0 %v257
    %955 = vmatpush.msra.mxu0 %v251
    %956 = vmatpush.msra.mxu0 %v245
    %957 = vmatpush.msra.mxu0 %v239
    %958 = vmatpush.msra.mxu0 %v233
    %959 = vmatpush.msra.mxu0 %v227
    %960 = vmatpush.msra.mxu0 %v221
    %961 = vmatpush.msra.mxu0 %v215
    %962 = vmatpush.msra.mxu0 %v209
    %963 = vmatpush.msra.mxu0 %v203
    %964 = vmatpush.msra.mxu0 %v197
    %965 = vmatmul.f32.gmra.mxu0 %v94
    %v966 = vpop.f32.mrf.mxu0
    %v967 = vadd.f32 %v947, %v966
    %968 = vdwg.mxu0
    %969 = vmatpush.msra.mxu0 %v383
    %970 = vmatpush.msra.mxu0 %v377
    %971 = vmatpush.msra.mxu0 %v371
    %972 = vmatpush.msra.mxu0 %v365
    %973 = vmatpush.msra.mxu0 %v359
    %974 = vmatpush.msra.mxu0 %v353
    %975 = vmatpush.msra.mxu0 %v347
    %976 = vmatpush.msra.mxu0 %v341
    %977 = vmatpush.msra.mxu0 %v335
    %978 = vmatpush.msra.mxu0 %v329
    %979 = vmatpush.msra.mxu0 %v323
    %980 = vmatpush.msra.mxu0 %v317
    %981 = vmatpush.msra.mxu0 %v311
    %982 = vmatpush.msra.mxu0 %v305
    %983 = vmatpush.msra.mxu0 %v299
    %984 = vmatpush.msra.mxu0 %v293
    %985 = vmatmul.f32.gmra.mxu0 %v95
    %v986 = vpop.f32.mrf.mxu0
    %v987 = vadd.f32 %v967, %v986
    %988 = vdwg.mxu0
    %989 = vmatpush.msra.mxu0 %v479
    %990 = vmatpush.msra.mxu0 %v473
    %991 = vmatpush.msra.mxu0 %v467
    %992 = vmatpush.msra.mxu0 %v461
    %993 = vmatpush.msra.mxu0 %v455
    %994 = vmatpush.msra.mxu0 %v449
    %995 = vmatpush.msra.mxu0 %v443
    %996 = vmatpush.msra.mxu0 %v437
    %997 = vmatpush.msra.mxu0 %v431
    %998 = vmatpush.msra.mxu0 %v425
    %999 = vmatpush.msra.mxu0 %v419
    %1000 = vmatpush.msra.mxu0 %v413
    %1001 = vmatpush.msra.mxu0 %v407
    %1002 = vmatpush.msra.mxu0 %v401
    %1003 = vmatpush.msra.mxu0 %v395
    %1004 = vmatpush.msra.mxu0 %v389
    %1005 = vmatmul.f32.gmra.mxu0 %v96
    %v1006 = vpop.f32.mrf.mxu0
    %v1007 = vadd.f32 %v987, %v1006
    %1008 = vdwg.mxu0
    %1009 = vmatpush.msra.mxu0 %v575
    %1010 = vmatpush.msra.mxu0 %v569
    %1011 = vmatpush.msra.mxu0 %v563
    %1012 = vmatpush.msra.mxu0 %v557
    %1013 = vmatpush.msra.mxu0 %v551
    %1014 = vmatpush.msra.mxu0 %v545
    %1015 = vmatpush.msra.mxu0 %v539
    %1016 = vmatpush.msra.mxu0 %v533
    %1017 = vmatpush.msra.mxu0 %v527
    %1018 = vmatpush.msra.mxu0 %v521
    %1019 = vmatpush.msra.mxu0 %v515
    %1020 = vmatpush.msra.mxu0 %v509
    %1021 = vmatpush.msra.mxu0 %v503
    %1022 = vmatpush.msra.mxu0 %v497
    %1023 = vmatpush.msra.mxu0 %v491
    %1024 = vmatpush.msra.mxu0 %v485
    %1025 = vmatmul.f32.gmra.mxu0 %v97
    %v1026 = vpop.f32.mrf.mxu0
    %v1027 = vadd.f32 %v1007, %v1026
    %1028 = vdwg.mxu0
    %1029 = vmatpush.msra.mxu0 %v671
    %1030 = vmatpush.msra.mxu0 %v665
    %1031 = vmatpush.msra.mxu0 %v659
    %1032 = vmatpush.msra.mxu0 %v653
    %1033 = vmatpush.msra.mxu0 %v647
    %1034 = vmatpush.msra.mxu0 %v641
    %1035 = vmatpush.msra.mxu0 %v635
    %1036 = vmatpush.msra.mxu0 %v629
    %1037 = vmatpush.msra.mxu0 %v623
    %1038 = vmatpush.msra.mxu0 %v617
    %1039 = vmatpush.msra.mxu0 %v611
    %1040 = vmatpush.msra.mxu0 %v605
    %1041 = vmatpush.msra.mxu0 %v599
    %1042 = vmatpush.msra.mxu0 %v593
    %1043 = vmatpush.msra.mxu0 %v587
    %1044 = vmatpush.msra.mxu0 %v581
    %1045 = vmatmul.f32.gmra.mxu0 %v98
    %v1046 = vpop.f32.mrf.mxu0
    %v1047 = vadd.f32 %v1027, %v1046
    %1048 = vdwg.mxu0
    %1049 = vmatpush.msra.mxu0 %v192
    %1050 = vmatpush.msra.mxu0 %v186
    %1051 = vmatpush.msra.mxu0 %v180
    %1052 = vmatpush.msra.mxu0 %v174
    %1053 = vmatpush.msra.mxu0 %v168
    %1054 = vmatpush.msra.mxu0 %v162
    %1055 = vmatpush.msra.mxu0 %v156
    %1056 = vmatpush.msra.mxu0 %v150
    %1057 = vmatpush.msra.mxu0 %v144
    %1058 = vmatpush.msra.mxu0 %v138
    %1059 = vmatpush.msra.mxu0 %v132
    %1060 = vmatpush.msra.mxu0 %v126
    %1061 = vmatpush.msra.mxu0 %v120
    %1062 = vmatpush.msra.mxu0 %v114
    %1063 = vmatpush.msra.mxu0 %v108
    %1064 = vmatpush.msra.mxu0 %v102
    %1065 = vmatmul.f32.gmra.mxu0 %v93
    %v1066 = vpop.f32.mrf.mxu0
    %v1067 = vadd.f32 %v680, %v1066
    %1068 = vdwg.mxu0
    %1069 = vmatpush.msra.mxu0 %v288
    %1070 = vmatpush.msra.mxu0 %v282
    %1071 = vmatpush.msra.mxu0 %v276
    %1072 = vmatpush.msra.mxu0 %v270
    %1073 = vmatpush.msra.mxu0 %v264
    %1074 = vmatpush.msra.mxu0 %v258
    %1075 = vmatpush.msra.mxu0 %v252
    %1076 = vmatpush.msra.mxu0 %v246
    %1077 = vmatpush.msra.mxu0 %v240
    %1078 = vmatpush.msra.mxu0 %v234
    %1079 = vmatpush.msra.mxu0 %v228
    %1080 = vmatpush.msra.mxu0 %v222
    %1081 = vmatpush.msra.mxu0 %v216
    %1082 = vmatpush.msra.mxu0 %v210
    %1083 = vmatpush.msra.mxu0 %v204
    %1084 = vmatpush.msra.mxu0 %v198
    %1085 = vmatmul.f32.gmra.mxu0 %v94
    %v1086 = vpop.f32.mrf.mxu0
    %v1087 = vadd.f32 %v1067, %v1086
    %1088 = vdwg.mxu0
    %1089 = vmatpush.msra.mxu0 %v384
    %1090 = vmatpush.msra.mxu0 %v378
    %1091 = vmatpush.msra.mxu0 %v372
    %1092 = vmatpush.msra.mxu0 %v366
    %1093 = vmatpush.msra.mxu0 %v360
    %1094 = vmatpush.msra.mxu0 %v354
    %1095 = vmatpush.msra.mxu0 %v348
    %1096 = vmatpush.msra.mxu0 %v342
    %1097 = vmatpush.msra.mxu0 %v336
    %1098 = vmatpush.msra.mxu0 %v330
    %1099 = vmatpush.msra.mxu0 %v324
    %1100 = vmatpush.msra.mxu0 %v318
    %1101 = vmatpush.msra.mxu0 %v312
    %1102 = vmatpush.msra.mxu0 %v306
    %1103 = vmatpush.msra.mxu0 %v300
    %1104 = vmatpush.msra.mxu0 %v294
    %1105 = vmatmul.f32.gmra.mxu0 %v95
    %v1106 = vpop.f32.mrf.mxu0
    %v1107 = vadd.f32 %v1087, %v1106
    %1108 = vdwg.mxu0
    %1109 = vmatpush.msra.mxu0 %v480
    %1110 = vmatpush.msra.mxu0 %v474
    %1111 = vmatpush.msra.mxu0 %v468
    %1112 = vmatpush.msra.mxu0 %v462
    %1113 = vmatpush.msra.mxu0 %v456
    %1114 = vmatpush.msra.mxu0 %v450
    %1115 = vmatpush.msra.mxu0 %v444
    %1116 = vmatpush.msra.mxu0 %v438
    %1117 = vmatpush.msra.mxu0 %v432
    %1118 = vmatpush.msra.mxu0 %v426
    %1119 = vmatpush.msra.mxu0 %v420
    %1120 = vmatpush.msra.mxu0 %v414
    %1121 = vmatpush.msra.mxu0 %v408
    %1122 = vmatpush.msra.mxu0 %v402
    %1123 = vmatpush.msra.mxu0 %v396
    %1124 = vmatpush.msra.mxu0 %v390
    %1125 = vmatmul.f32.gmra.mxu0 %v96
    %v1126 = vpop.f32.mrf.mxu0
    %v1127 = vadd.f32 %v1107, %v1126
    %1128 = vdwg.mxu0
    %1129 = vmatpush.msra.mxu0 %v576
    %1130 = vmatpush.msra.mxu0 %v570
    %1131 = vmatpush.msra.mxu0 %v564
    %1132 = vmatpush.msra.mxu0 %v558
    %1133 = vmatpush.msra.mxu0 %v552
    %1134 = vmatpush.msra.mxu0 %v546
    %1135 = vmatpush.msra.mxu0 %v540
    %1136 = vmatpush.msra.mxu0 %v534
    %1137 = vmatpush.msra.mxu0 %v528
    %1138 = vmatpush.msra.mxu0 %v522
    %1139 = vmatpush.msra.mxu0 %v516
    %1140 = vmatpush.msra.mxu0 %v510
    %1141 = vmatpush.msra.mxu0 %v504
    %1142 = vmatpush.msra.mxu0 %v498
    %1143 = vmatpush.msra.mxu0 %v492
    %1144 = vmatpush.msra.mxu0 %v486
    %1145 = vmatmul.f32.gmra.mxu0 %v97
    %v1146 = vpop.f32.mrf.mxu0
    %v1147 = vadd.f32 %v1127, %v1146
    %1148 = vdwg.mxu0
    %1149 = vmatpush.msra.mxu0 %v672
    %1150 = vmatpush.msra.mxu0 %v666
    %1151 = vmatpush.msra.mxu0 %v660
    %1152 = vmatpush.msra.mxu0 %v654
    %1153 = vmatpush.msra.mxu0 %v648
    %1154 = vmatpush.msra.mxu0 %v642
    %1155 = vmatpush.msra.mxu0 %v636
    %1156 = vmatpush.msra.mxu0 %v630
    %1157 = vmatpush.msra.mxu0 %v624
    %1158 = vmatpush.msra.mxu0 %v618
    %1159 = vmatpush.msra.mxu0 %v612
    %1160 = vmatpush.msra.mxu0 %v606
    %1161 = vmatpush.msra.mxu0 %v600
    %1162 = vmatpush.msra.mxu0 %v594
    %1163 = vmatpush.msra.mxu0 %v588
    %1164 = vmatpush.msra.mxu0 %v582
    %1165 = vmatmul.f32.gmra.mxu0 %v98
    %v1166 = vpop.f32.mrf.mxu0
    %v1167 = vadd.f32 %v1147, %v1166
    %1168 = vdwg.mxu0
    %1169 = vmatpush.msra.mxu0 %v193
    %1170 = vmatpush.msra.mxu0 %v187
    %1171 = vmatpush.msra.mxu0 %v181
    %1172 = vmatpush.msra.mxu0 %v175
    %1173 = vmatpush.msra.mxu0 %v169
    %1174 = vmatpush.msra.mxu0 %v163
    %1175 = vmatpush.msra.mxu0 %v157
    %1176 = vmatpush.msra.mxu0 %v151
    %1177 = vmatpush.msra.mxu0 %v145
    %1178 = vmatpush.msra.mxu0 %v139
    %1179 = vmatpush.msra.mxu0 %v133
    %1180 = vmatpush.msra.mxu0 %v127
    %1181 = vmatpush.msra.mxu0 %v121
    %1182 = vmatpush.msra.mxu0 %v115
    %1183 = vmatpush.msra.mxu0 %v109
    %1184 = vmatpush.msra.mxu0 %v103
    %1185 = vmatmul.f32.gmra.mxu0 %v93
    %v1186 = vpop.f32.mrf.mxu0
    %v1187 = vadd.f32 %v681, %v1186
    %1188 = vdwg.mxu0
    %1189 = vmatpush.msra.mxu0 %v289
    %1190 = vmatpush.msra.mxu0 %v283
    %1191 = vmatpush.msra.mxu0 %v277
    %1192 = vmatpush.msra.mxu0 %v271
    %1193 = vmatpush.msra.mxu0 %v265
    %1194 = vmatpush.msra.mxu0 %v259
    %1195 = vmatpush.msra.mxu0 %v253
    %1196 = vmatpush.msra.mxu0 %v247
    %1197 = vmatpush.msra.mxu0 %v241
    %1198 = vmatpush.msra.mxu0 %v235
    %1199 = vmatpush.msra.mxu0 %v229
    %1200 = vmatpush.msra.mxu0 %v223
    %1201 = vmatpush.msra.mxu0 %v217
    %1202 = vmatpush.msra.mxu0 %v211
    %1203 = vmatpush.msra.mxu0 %v205
    %1204 = vmatpush.msra.mxu0 %v199
    %1205 = vmatmul.f32.gmra.mxu0 %v94
    %v1206 = vpop.f32.mrf.mxu0
    %v1207 = vadd.f32 %v1187, %v1206
    %1208 = vdwg.mxu0
    %1209 = vmatpush.msra.mxu0 %v385
    %1210 = vmatpush.msra.mxu0 %v379
    %1211 = vmatpush.msra.mxu0 %v373
    %1212 = vmatpush.msra.mxu0 %v367
    %1213 = vmatpush.msra.mxu0 %v361
    %1214 = vmatpush.msra.mxu0 %v355
    %1215 = vmatpush.msra.mxu0 %v349
    %1216 = vmatpush.msra.mxu0 %v343
    %1217 = vmatpush.msra.mxu0 %v337
    %1218 = vmatpush.msra.mxu0 %v331
    %1219 = vmatpush.msra.mxu0 %v325
    %1220 = vmatpush.msra.mxu0 %v319
    %1221 = vmatpush.msra.mxu0 %v313
    %1222 = vmatpush.msra.mxu0 %v307
    %1223 = vmatpush.msra.mxu0 %v301
    %1224 = vmatpush.msra.mxu0 %v295
    %1225 = vmatmul.f32.gmra.mxu0 %v95
    %v1226 = vpop.f32.mrf.mxu0
    %v1227 = vadd.f32 %v1207, %v1226
    %1228 = vdwg.mxu0
    %1229 = vmatpush.msra.mxu0 %v481
    %1230 = vmatpush.msra.mxu0 %v475
    %1231 = vmatpush.msra.mxu0 %v469
    %1232 = vmatpush.msra.mxu0 %v463
    %1233 = vmatpush.msra.mxu0 %v457
    %1234 = vmatpush.msra.mxu0 %v451
    %1235 = vmatpush.msra.mxu0 %v445
    %1236 = vmatpush.msra.mxu0 %v439
    %1237 = vmatpush.msra.mxu0 %v433
    %1238 = vmatpush.msra.mxu0 %v427
    %1239 = vmatpush.msra.mxu0 %v421
    %1240 = vmatpush.msra.mxu0 %v415
    %1241 = vmatpush.msra.mxu0 %v409
    %1242 = vmatpush.msra.mxu0 %v403
    %1243 = vmatpush.msra.mxu0 %v397
    %1244 = vmatpush.msra.mxu0 %v391
    %1245 = vmatmul.f32.gmra.mxu0 %v96
    %v1246 = vpop.f32.mrf.mxu0
    %v1247 = vadd.f32 %v1227, %v1246
    %1248 = vdwg.mxu0
    %1249 = vmatpush.msra.mxu0 %v577
    %1250 = vmatpush.msra.mxu0 %v571
    %1251 = vmatpush.msra.mxu0 %v565
    %1252 = vmatpush.msra.mxu0 %v559
    %1253 = vmatpush.msra.mxu0 %v553
    %1254 = vmatpush.msra.mxu0 %v547
    %1255 = vmatpush.msra.mxu0 %v541
    %1256 = vmatpush.msra.mxu0 %v535
    %1257 = vmatpush.msra.mxu0 %v529
    %1258 = vmatpush.msra.mxu0 %v523
    %1259 = vmatpush.msra.mxu0 %v517
    %1260 = vmatpush.msra.mxu0 %v511
    %1261 = vmatpush.msra.mxu0 %v505
    %1262 = vmatpush.msra.mxu0 %v499
    %1263 = vmatpush.msra.mxu0 %v493
    %1264 = vmatpush.msra.mxu0 %v487
    %1265 = vmatmul.f32.gmra.mxu0 %v97
    %v1266 = vpop.f32.mrf.mxu0
    %v1267 = vadd.f32 %v1247, %v1266
    %1268 = vdwg.mxu0
    %1269 = vmatpush.msra.mxu0 %v673
    %1270 = vmatpush.msra.mxu0 %v667
    %1271 = vmatpush.msra.mxu0 %v661
    %1272 = vmatpush.msra.mxu0 %v655
    %1273 = vmatpush.msra.mxu0 %v649
    %1274 = vmatpush.msra.mxu0 %v643
    %1275 = vmatpush.msra.mxu0 %v637
    %1276 = vmatpush.msra.mxu0 %v631
    %1277 = vmatpush.msra.mxu0 %v625
    %1278 = vmatpush.msra.mxu0 %v619
    %1279 = vmatpush.msra.mxu0 %v613
    %1280 = vmatpush.msra.mxu0 %v607
    %1281 = vmatpush.msra.mxu0 %v601
    %1282 = vmatpush.msra.mxu0 %v595
    %1283 = vmatpush.msra.mxu0 %v589
    %1284 = vmatpush.msra.mxu0 %v583
    %1285 = vmatmul.f32.gmra.mxu0 %v98
    %v1286 = vpop.f32.mrf.mxu0
    %v1287 = vadd.f32 %v1267, %v1286
    %1288 = vdwg.mxu0
    %1289 = vmatpush.msra.mxu0 %v194
    %1290 = vmatpush.msra.mxu0 %v188
    %1291 = vmatpush.msra.mxu0 %v182
    %1292 = vmatpush.msra.mxu0 %v176
    %1293 = vmatpush.msra.mxu0 %v170
    %1294 = vmatpush.msra.mxu0 %v164
    %1295 = vmatpush.msra.mxu0 %v158
    %1296 = vmatpush.msra.mxu0 %v152
    %1297 = vmatpush.msra.mxu0 %v146
    %1298 = vmatpush.msra.mxu0 %v140
    %1299 = vmatpush.msra.mxu0 %v134
    %1300 = vmatpush.msra.mxu0 %v128
    %1301 = vmatpush.msra.mxu0 %v122
    %1302 = vmatpush.msra.mxu0 %v116
    %1303 = vmatpush.msra.mxu0 %v110
    %1304 = vmatpush.msra.mxu0 %v104
    %1305 = vmatmul.f32.gmra.mxu0 %v93
    %v1306 = vpop.f32.mrf.mxu0
    %v1307 = vadd.f32 %v682, %v1306
    %1308 = vdwg.mxu0
    %1309 = vmatpush.msra.mxu0 %v290
    %1310 = vmatpush.msra.mxu0 %v284
    %1311 = vmatpush.msra.mxu0 %v278
    %1312 = vmatpush.msra.mxu0 %v272
    %1313 = vmatpush.msra.mxu0 %v266
    %1314 = vmatpush.msra.mxu0 %v260
    %1315 = vmatpush.msra.mxu0 %v254
    %1316 = vmatpush.msra.mxu0 %v248
    %1317 = vmatpush.msra.mxu0 %v242
    %1318 = vmatpush.msra.mxu0 %v236
    %1319 = vmatpush.msra.mxu0 %v230
    %1320 = vmatpush.msra.mxu0 %v224
    %1321 = vmatpush.msra.mxu0 %v218
    %1322 = vmatpush.msra.mxu0 %v212
    %1323 = vmatpush.msra.mxu0 %v206
    %1324 = vmatpush.msra.mxu0 %v200
    %1325 = vmatmul.f32.gmra.mxu0 %v94
    %v1326 = vpop.f32.mrf.mxu0
    %v1327 = vadd.f32 %v1307, %v1326
    %1328 = vdwg.mxu0
    %1329 = vmatpush.msra.mxu0 %v386
    %1330 = vmatpush.msra.mxu0 %v380
    %1331 = vmatpush.msra.mxu0 %v374
    %1332 = vmatpush.msra.mxu0 %v368
    %1333 = vmatpush.msra.mxu0 %v362
    %1334 = vmatpush.msra.mxu0 %v356
    %1335 = vmatpush.msra.mxu0 %v350
    %1336 = vmatpush.msra.mxu0 %v344
    %1337 = vmatpush.msra.mxu0 %v338
    %1338 = vmatpush.msra.mxu0 %v332
    %1339 = vmatpush.msra.mxu0 %v326
    %1340 = vmatpush.msra.mxu0 %v320
    %1341 = vmatpush.msra.mxu0 %v314
    %1342 = vmatpush.msra.mxu0 %v308
    %1343 = vmatpush.msra.mxu0 %v302
    %1344 = vmatpush.msra.mxu0 %v296
    %1345 = vmatmul.f32.gmra.mxu0 %v95
    %v1346 = vpop.f32.mrf.mxu0
    %v1347 = vadd.f32 %v1327, %v1346
    %1348 = vdwg.mxu0
    %1349 = vmatpush.msra.mxu0 %v482
    %1350 = vmatpush.msra.mxu0 %v476
    %1351 = vmatpush.msra.mxu0 %v470
    %1352 = vmatpush.msra.mxu0 %v464
    %1353 = vmatpush.msra.mxu0 %v458
    %1354 = vmatpush.msra.mxu0 %v452
    %1355 = vmatpush.msra.mxu0 %v446
    %1356 = vmatpush.msra.mxu0 %v440
    %1357 = vmatpush.msra.mxu0 %v434
    %1358 = vmatpush.msra.mxu0 %v428
    %1359 = vmatpush.msra.mxu0 %v422
    %1360 = vmatpush.msra.mxu0 %v416
    %1361 = vmatpush.msra.mxu0 %v410
    %1362 = vmatpush.msra.mxu0 %v404
    %1363 = vmatpush.msra.mxu0 %v398
    %1364 = vmatpush.msra.mxu0 %v392
    %1365 = vmatmul.f32.gmra.mxu0 %v96
    %v1366 = vpop.f32.mrf.mxu0
    %v1367 = vadd.f32 %v1347, %v1366
    %1368 = vdwg.mxu0
    %1369 = vmatpush.msra.mxu0 %v578
    %1370 = vmatpush.msra.mxu0 %v572
    %1371 = vmatpush.msra.mxu0 %v566
    %1372 = vmatpush.msra.mxu0 %v560
    %1373 = vmatpush.msra.mxu0 %v554
    %1374 = vmatpush.msra.mxu0 %v548
    %1375 = vmatpush.msra.mxu0 %v542
    %1376 = vmatpush.msra.mxu0 %v536
    %1377 = vmatpush.msra.mxu0 %v530
    %1378 = vmatpush.msra.mxu0 %v524
    %1379 = vmatpush.msra.mxu0 %v518
    %1380 = vmatpush.msra.mxu0 %v512
    %1381 = vmatpush.msra.mxu0 %v506
    %1382 = vmatpush.msra.mxu0 %v500
    %1383 = vmatpush.msra.mxu0 %v494
    %1384 = vmatpush.msra.mxu0 %v488
    %1385 = vmatmul.f32.gmra.mxu0 %v97
    %v1386 = vpop.f32.mrf.mxu0
    %v1387 = vadd.f32 %v1367, %v1386
    %1388 = vdwg.mxu0
    %1389 = vmatpush.msra.mxu0 %v674
    %1390 = vmatpush.msra.mxu0 %v668
    %1391 = vmatpush.msra.mxu0 %v662
    %1392 = vmatpush.msra.mxu0 %v656
    %1393 = vmatpush.msra.mxu0 %v650
    %1394 = vmatpush.msra.mxu0 %v644
    %1395 = vmatpush.msra.mxu0 %v638
    %1396 = vmatpush.msra.mxu0 %v632
    %1397 = vmatpush.msra.mxu0 %v626
    %1398 = vmatpush.msra.mxu0 %v620
    %1399 = vmatpush.msra.mxu0 %v614
    %1400 = vmatpush.msra.mxu0 %v608
    %1401 = vmatpush.msra.mxu0 %v602
    %1402 = vmatpush.msra.mxu0 %v596
    %1403 = vmatpush.msra.mxu0 %v590
    %1404 = vmatpush.msra.mxu0 %v584
    %1405 = vmatmul.f32.gmra.mxu0 %v98
    %v1406 = vpop.f32.mrf.mxu0
    %v1407 = vadd.f32 %v1387, %v1406
    %1408 = vdwg.mxu0
    %v1409 = vtanh.pop %v807
    %v1410 = vtanh.pop %v927
    %v1411 = vtanh.pop %v1047
    %v1412 = vtanh.pop %v1167
    %v1413 = vtanh.pop %v1287
    %v1414 = vtanh.pop %v1407
    %v1415 = vld [vmem:[#allocation8] sm:$0xff]
    %v1416 = vld [vmem:[#allocation8 + $0x8] sm:$0xff]
    %v1417 = vld [vmem:[#allocation8 + $0x10] sm:$0xff]
    %v1418 = vld [vmem:[#allocation8 + $0x18] sm:$0xff]
    %v1419 = vld [vmem:[#allocation8 + $0x20] sm:$0xff]
    %v1420 = vld [vmem:[#allocation8 + $0x28] sm:$0xff]
    %v1421 = vld [vmem:[#allocation8 + $0x30] sm:$0xff]
    %v1422 = vld [vmem:[#allocation8 + $0x38] sm:$0xff]
    %v1423 = vld [vmem:[#allocation8 + $0x40] sm:$0xff]
    %v1424 = vld [vmem:[#allocation8 + $0x48] sm:$0xff]
    %v1425 = vld [vmem:[#allocation8 + $0x50] sm:$0xff]
    %v1426 = vld [vmem:[#allocation8 + $0x58] sm:$0xff]
    %v1427 = vld [vmem:[#allocation8 + $0x60] sm:$0xff]
    %v1428 = vld [vmem:[#allocation8 + $0x68] sm:$0xff]
    %v1429 = vld [vmem:[#allocation8 + $0x70] sm:$0xff]
    %v1430 = vld [vmem:[#allocation8 + $0x78] sm:$0xff]
    %v1431 = vld [vmem:[#allocation8 + $0x80] sm:$0xff]
    %v1432 = vld [vmem:[#allocation8 + $0x88] sm:$0xff]
    %v1433 = vld [vmem:[#allocation8 + $0x90] sm:$0xff]
    %v1434 = vld [vmem:[#allocation8 + $0x98] sm:$0xff]
    %v1435 = vld [vmem:[#allocation8 + $0xa0] sm:$0xff]
    %v1436 = vld [vmem:[#allocation8 + $0xa8] sm:$0xff]
    %v1437 = vld [vmem:[#allocation8 + $0xb0] sm:$0xff]
    %v1438 = vld [vmem:[#allocation8 + $0xb8] sm:$0xff]
    %v1439 = vld [vmem:[#allocation8 + $0xc0] sm:$0xff]
    %v1440 = vld [vmem:[#allocation8 + $0xc8] sm:$0xff]
    %v1441 = vld [vmem:[#allocation8 + $0xd0] sm:$0xff]
    %v1442 = vld [vmem:[#allocation8 + $0xd8] sm:$0xff]
    %v1443 = vld [vmem:[#allocation8 + $0xe0] sm:$0xff]
    %v1444 = vld [vmem:[#allocation8 + $0xe8] sm:$0xff]
    %v1445 = vld [vmem:[#allocation8 + $0xf0] sm:$0xff]
    %v1446 = vld [vmem:[#allocation8 + $0xf8] sm:$0xff]
    %v1447 = vld [vmem:[#allocation8 + $0x100] sm:$0xff]
    %v1448 = vld [vmem:[#allocation8 + $0x108] sm:$0xff]
    %v1449 = vld [vmem:[#allocation8 + $0x110] sm:$0xff]
    %v1450 = vld [vmem:[#allocation8 + $0x118] sm:$0xff]
    %v1451 = vld [vmem:[#allocation8 + $0x120] sm:$0xff]
    %v1452 = vld [vmem:[#allocation8 + $0x128] sm:$0xff]
    %v1453 = vld [vmem:[#allocation8 + $0x130] sm:$0xff]
    %v1454 = vld [vmem:[#allocation8 + $0x138] sm:$0xff]
    %v1455 = vld [vmem:[#allocation8 + $0x140] sm:$0xff]
    %v1456 = vld [vmem:[#allocation8 + $0x148] sm:$0xff]
    %v1457 = vld [vmem:[#allocation8 + $0x150] sm:$0xff]
    %v1458 = vld [vmem:[#allocation8 + $0x158] sm:$0xff]
    %v1459 = vld [vmem:[#allocation8 + $0x160] sm:$0xff]
    %v1460 = vld [vmem:[#allocation8 + $0x168] sm:$0xff]
    %v1461 = vld [vmem:[#allocation8 + $0x170] sm:$0xff]
    %v1462 = vld [vmem:[#allocation8 + $0x178] sm:$0xff]
    %v1463 = vld [vmem:[#allocation8 + $0x180] sm:$0xff]
    %v1464 = vld [vmem:[#allocation8 + $0x188] sm:$0xff]
    %v1465 = vld [vmem:[#allocation8 + $0x190] sm:$0xff]
    %v1466 = vld [vmem:[#allocation8 + $0x198] sm:$0xff]
    %v1467 = vld [vmem:[#allocation8 + $0x1a0] sm:$0xff]
    %v1468 = vld [vmem:[#allocation8 + $0x1a8] sm:$0xff]
    %v1469 = vld [vmem:[#allocation8 + $0x1b0] sm:$0xff]
    %v1470 = vld [vmem:[#allocation8 + $0x1b8] sm:$0xff]
    %v1471 = vld [vmem:[#allocation8 + $0x1c0] sm:$0xff]
    %v1472 = vld [vmem:[#allocation8 + $0x1c8] sm:$0xff]
    %v1473 = vld [vmem:[#allocation8 + $0x1d0] sm:$0xff]
    %v1474 = vld [vmem:[#allocation8 + $0x1d8] sm:$0xff]
    %v1475 = vld [vmem:[#allocation8 + $0x1e0] sm:$0xff]
    %v1476 = vld [vmem:[#allocation8 + $0x1e8] sm:$0xff]
    %v1477 = vld [vmem:[#allocation8 + $0x1f0] sm:$0xff]
    %v1478 = vld [vmem:[#allocation8 + $0x1f8] sm:$0xff]
    %v1479 = vld [vmem:[#allocation8 + $0x200] sm:$0xff]
    %v1480 = vld [vmem:[#allocation8 + $0x208] sm:$0xff]
    %v1481 = vld [vmem:[#allocation8 + $0x210] sm:$0xff]
    %v1482 = vld [vmem:[#allocation8 + $0x218] sm:$0xff]
    %v1483 = vld [vmem:[#allocation8 + $0x220] sm:$0xff]
    %v1484 = vld [vmem:[#allocation8 + $0x228] sm:$0xff]
    %v1485 = vld [vmem:[#allocation8 + $0x230] sm:$0xff]
    %v1486 = vld [vmem:[#allocation8 + $0x238] sm:$0xff]
    %v1487 = vld [vmem:[#allocation8 + $0x240] sm:$0xff]
    %v1488 = vld [vmem:[#allocation8 + $0x248] sm:$0xff]
    %v1489 = vld [vmem:[#allocation8 + $0x250] sm:$0xff]
    %v1490 = vld [vmem:[#allocation8 + $0x258] sm:$0xff]
    %v1491 = vld [vmem:[#allocation8 + $0x260] sm:$0xff]
    %v1492 = vld [vmem:[#allocation8 + $0x268] sm:$0xff]
    %v1493 = vld [vmem:[#allocation8 + $0x270] sm:$0xff]
    %v1494 = vld [vmem:[#allocation8 + $0x278] sm:$0xff]
    %v1495 = vld [vmem:[#allocation8 + $0x280] sm:$0xff]
    %v1496 = vld [vmem:[#allocation8 + $0x288] sm:$0xff]
    %v1497 = vld [vmem:[#allocation8 + $0x290] sm:$0xff]
    %v1498 = vld [vmem:[#allocation8 + $0x298] sm:$0xff]
    %v1499 = vld [vmem:[#allocation8 + $0x2a0] sm:$0xff]
    %v1500 = vld [vmem:[#allocation8 + $0x2a8] sm:$0xff]
    %v1501 = vld [vmem:[#allocation8 + $0x2b0] sm:$0xff]
    %v1502 = vld [vmem:[#allocation8 + $0x2b8] sm:$0xff]
    %v1503 = vld [vmem:[#allocation8 + $0x2c0] sm:$0xff]
    %v1504 = vld [vmem:[#allocation8 + $0x2c8] sm:$0xff]
    %v1505 = vld [vmem:[#allocation8 + $0x2d0] sm:$0xff]
    %v1506 = vld [vmem:[#allocation8 + $0x2d8] sm:$0xff]
    %v1507 = vld [vmem:[#allocation8 + $0x2e0] sm:$0xff]
    %v1508 = vld [vmem:[#allocation8 + $0x2e8] sm:$0xff]
    %v1509 = vld [vmem:[#allocation8 + $0x2f0] sm:$0xff]
    %v1510 = vld [vmem:[#allocation8 + $0x2f8] sm:$0xff]
    %v1511 = vld [vmem:[#allocation10] sm:$0x1]
    %v1513 = vperm.slane %v1511, 0
    %1515 = vmatpush.msra.mxu0 %v1430
    %1516 = vmatpush.msra.mxu0 %v1429
    %1517 = vmatpush.msra.mxu0 %v1428
    %1518 = vmatpush.msra.mxu0 %v1427
    %1519 = vmatpush.msra.mxu0 %v1426
    %1520 = vmatpush.msra.mxu0 %v1425
    %1521 = vmatpush.msra.mxu0 %v1424
    %1522 = vmatpush.msra.mxu0 %v1423
    %1523 = vmatpush.msra.mxu0 %v1422
    %1524 = vmatpush.msra.mxu0 %v1421
    %1525 = vmatpush.msra.mxu0 %v1420
    %1526 = vmatpush.msra.mxu0 %v1419
    %1527 = vmatpush.msra.mxu0 %v1418
    %1528 = vmatpush.msra.mxu0 %v1417
    %1529 = vmatpush.msra.mxu0 %v1416
    %1530 = vmatpush.msra.mxu0 %v1415
    %1531 = vmatmul.f32.gmra.mxu0 %v1409
    %v1532 = vpop.f32.mrf.mxu0
    %v1533 = vadd.f32 %v1513, %v1532
    %1534 = vdwg.mxu0
    %1535 = vmatpush.msra.mxu0 %v1446
    %1536 = vmatpush.msra.mxu0 %v1445
    %1537 = vmatpush.msra.mxu0 %v1444
    %1538 = vmatpush.msra.mxu0 %v1443
    %1539 = vmatpush.msra.mxu0 %v1442
    %1540 = vmatpush.msra.mxu0 %v1441
    %1541 = vmatpush.msra.mxu0 %v1440
    %1542 = vmatpush.msra.mxu0 %v1439
    %1543 = vmatpush.msra.mxu0 %v1438
    %1544 = vmatpush.msra.mxu0 %v1437
    %1545 = vmatpush.msra.mxu0 %v1436
    %1546 = vmatpush.msra.mxu0 %v1435
    %1547 = vmatpush.msra.mxu0 %v1434
    %1548 = vmatpush.msra.mxu0 %v1433
    %1549 = vmatpush.msra.mxu0 %v1432
    %1550 = vmatpush.msra.mxu0 %v1431
    %1551 = vmatmul.f32.gmra.mxu0 %v1410
    %v1552 = vpop.f32.mrf.mxu0
    %v1553 = vadd.f32 %v1533, %v1552
    %1554 = vdwg.mxu0
    %1555 = vmatpush.msra.mxu0 %v1462
    %1556 = vmatpush.msra.mxu0 %v1461
    %1557 = vmatpush.msra.mxu0 %v1460
    %1558 = vmatpush.msra.mxu0 %v1459
    %1559 = vmatpush.msra.mxu0 %v1458
    %1560 = vmatpush.msra.mxu0 %v1457
    %1561 = vmatpush.msra.mxu0 %v1456
    %1562 = vmatpush.msra.mxu0 %v1455
    %1563 = vmatpush.msra.mxu0 %v1454
    %1564 = vmatpush.msra.mxu0 %v1453
    %1565 = vmatpush.msra.mxu0 %v1452
    %1566 = vmatpush.msra.mxu0 %v1451
    %1567 = vmatpush.msra.mxu0 %v1450
    %1568 = vmatpush.msra.mxu0 %v1449
    %1569 = vmatpush.msra.mxu0 %v1448
    %1570 = vmatpush.msra.mxu0 %v1447
    %1571 = vmatmul.f32.gmra.mxu0 %v1411
    %v1572 = vpop.f32.mrf.mxu0
    %v1573 = vadd.f32 %v1553, %v1572
    %1574 = vdwg.mxu0
    %1575 = vmatpush.msra.mxu0 %v1478
    %1576 = vmatpush.msra.mxu0 %v1477
    %1577 = vmatpush.msra.mxu0 %v1476
    %1578 = vmatpush.msra.mxu0 %v1475
    %1579 = vmatpush.msra.mxu0 %v1474
    %1580 = vmatpush.msra.mxu0 %v1473
    %1581 = vmatpush.msra.mxu0 %v1472
    %1582 = vmatpush.msra.mxu0 %v1471
    %1583 = vmatpush.msra.mxu0 %v1470
    %1584 = vmatpush.msra.mxu0 %v1469
    %1585 = vmatpush.msra.mxu0 %v1468
    %1586 = vmatpush.msra.mxu0 %v1467
    %1587 = vmatpush.msra.mxu0 %v1466
    %1588 = vmatpush.msra.mxu0 %v1465
    %1589 = vmatpush.msra.mxu0 %v1464
    %1590 = vmatpush.msra.mxu0 %v1463
    %1591 = vmatmul.f32.gmra.mxu0 %v1412
    %v1592 = vpop.f32.mrf.mxu0
    %v1593 = vadd.f32 %v1573, %v1592
    %1594 = vdwg.mxu0
    %1595 = vmatpush.msra.mxu0 %v1494
    %1596 = vmatpush.msra.mxu0 %v1493
    %1597 = vmatpush.msra.mxu0 %v1492
    %1598 = vmatpush.msra.mxu0 %v1491
    %1599 = vmatpush.msra.mxu0 %v1490
    %1600 = vmatpush.msra.mxu0 %v1489
    %1601 = vmatpush.msra.mxu0 %v1488
    %1602 = vmatpush.msra.mxu0 %v1487
    %1603 = vmatpush.msra.mxu0 %v1486
    %1604 = vmatpush.msra.mxu0 %v1485
    %1605 = vmatpush.msra.mxu0 %v1484
    %1606 = vmatpush.msra.mxu0 %v1483
    %1607 = vmatpush.msra.mxu0 %v1482
    %1608 = vmatpush.msra.mxu0 %v1481
    %1609 = vmatpush.msra.mxu0 %v1480
    %1610 = vmatpush.msra.mxu0 %v1479
    %1611 = vmatmul.f32.gmra.mxu0 %v1413
    %v1612 = vpop.f32.mrf.mxu0
    %v1613 = vadd.f32 %v1593, %v1612
    %1614 = vdwg.mxu0
    %1615 = vmatpush.msra.mxu0 %v1510
    %1616 = vmatpush.msra.mxu0 %v1509
    %1617 = vmatpush.msra.mxu0 %v1508
    %1618 = vmatpush.msra.mxu0 %v1507
    %1619 = vmatpush.msra.mxu0 %v1506
    %1620 = vmatpush.msra.mxu0 %v1505
    %1621 = vmatpush.msra.mxu0 %v1504
    %1622 = vmatpush.msra.mxu0 %v1503
    %1623 = vmatpush.msra.mxu0 %v1502
    %1624 = vmatpush.msra.mxu0 %v1501
    %1625 = vmatpush.msra.mxu0 %v1500
    %1626 = vmatpush.msra.mxu0 %v1499
    %1627 = vmatpush.msra.mxu0 %v1498
    %1628 = vmatpush.msra.mxu0 %v1497
    %1629 = vmatpush.msra.mxu0 %v1496
    %1630 = vmatpush.msra.mxu0 %v1495
    %1631 = vmatmul.f32.gmra.mxu0 %v1414
    %v1632 = vpop.f32.mrf.mxu0
    %v1633 = vadd.f32 %v1613, %v1632
    %1634 = vdwg.mxu0
    %1635 = vst [vmem:[#allocation11] sm:$0xff] %v1633
    // Predicated region
    $region42: #{tpu_custom_call.1} parent=1 // pred_check
      _
    $region43: #{tpu_custom_call.1} parent=1 // pred_check_branch
      %1637 = sbr.rel (0) target = $region45
    $region44: #{tpu_custom_call.1} parent=1 // pred_region
      %1639 = vsyncadd [#allocation4], 0
      %s1641 = sshll.u32 [#allocation11], 4
      %s1642 = int_to_ptr.vmem [resolvable:$true] %s1641
      %s1643 = sshll.u32 %s5, 4
      %s1644 = int_to_ptr.hbm [resolvable:$true] %s1643
      %1646 = dma.vmem_to_hbm [thread:$0]  %s1642, 128, %s1644, [#allocation4]
    $region45: #{tpu_custom_call.1} parent=1 // pred_fallthru
      _
    // Predicated region
    $region46: #{tpu_custom_call.1} parent=1 // pred_check
      _
    $region47: #{tpu_custom_call.1} parent=1 // pred_check_branch
      %1648 = sbr.rel (0) target = $region49
    $region48: #{tpu_custom_call.1} parent=1 // pred_region
      %1650 = dma.done [#allocation4], 128
    $region49: #{tpu_custom_call.1} parent=1 // pred_fallthru
      _
    %1651 = vsyncpa [#allocation3], 1
    %1652 = vsyncpa [#allocation6], 1
    %1653 = vsyncpa [#allocation9], 1
    %1654 = vsyncpa [#allocation4], 1

</llo_original>
